<compile_context>
chip_gen: v5e
topology: v5e:2x2
jax: 0.10.0
libtpu: 0.0.40
codegen_flags: <defaults>
</compile_context>

<pallas_src>
import jax
import jax.numpy as jnp
from jax.experimental import pallas as pl
from jax.experimental.pallas import tpu as pltpu

KSIZE = 7
PAD = 3            # padding for kernel_size=7
_C_CHUNK = 8       # channels reduced per streaming step
_MAX_BT = 8        # max batch elements stacked per grid step (one sublane tile)


def _round_up(x, m):
    return ((x + m - 1) // m) * m


def _make_kernel(W, Bt, C, HWp, Lpad):
    TAIL = Lpad - HWp

    def kernel(w_ref, x_ref, o_ref, sum_sc, max_sc):
        # w_ref  : (2*7*7,) f32 in SMEM, [in_ch, kh, kw]; in_ch 0 pre-scaled by 1/C.
        # x_ref  : (Bt, C, HWp) VMEM block (lane-dense flattened spatial).
        # o_ref  : (Bt, HWp) VMEM block (leading grid dim squeezed).
        # sum_sc / max_sc : (Bt, Lpad) VMEM scratch (pooled plane + zero halo tail).

        # Hoist the 98 conv-weight scalar reads: once per grid step.
        wvals = [[[w_ref[(c * KSIZE + kh) * KSIZE + kw] for kw in range(KSIZE)]
                  for kh in range(KSIZE)] for c in range(2)]

        # Static per-kw column masks: kill lanes whose kw-offset crosses a row edge.
        j_idx = jax.lax.broadcasted_iota(jnp.int32, (Bt, HWp), 1) % W
        col_mask = []
        for kw in range(KSIZE):
            lo = max(0, PAD - kw)
            hi = min(W, W - (kw - PAD))
            col_mask.append(None if (lo == 0 and hi == W)
                            else (j_idx >= lo) & (j_idx < hi))

        # Zero the halo tail every step (tiny store per plane); safe regardless of how
        # the "parallel" grid axis is split across TensorCores (scratch is per-core).
        zero_tail = jnp.zeros((Bt, TAIL), jnp.float32)
        sum_sc[:, pl.ds(HWp, TAIL)] = zero_tail
        max_sc[:, pl.ds(HWp, TAIL)] = zero_tail

        # ---- channel pooling: stream C with element-wise partials, one cross-sublane
        #      reduce per plane per batch row, write rows into the stacked scratch.
        n_full = C // _C_CHUNK
        rem = C - n_full * _C_CHUNK
        for b in range(Bt):                       # static unroll; Bt <= 8
            if n_full >= 1:
                acc_s = x_ref[b, pl.ds(0, _C_CHUNK), :].astype(jnp.float32)
                acc_m = acc_s
                for g in range(1, n_full):
                    xc = x_ref[b, pl.ds(g * _C_CHUNK, _C_CHUNK), :].astype(jnp.float32)
                    acc_s = acc_s + xc
                    acc_m = jnp.maximum(acc_m, xc)
                vsum = jnp.sum(acc_s, axis=0, keepdims=True)      # (1, HWp)
                vmax = jnp.max(acc_m, axis=0, keepdims=True)
                if rem:
                    xr = x_ref[b, pl.ds(n_full * _C_CHUNK, rem), :].astype(jnp.float32)
                    vsum = vsum + jnp.sum(xr, axis=0, keepdims=True)
                    vmax = jnp.maximum(vmax, jnp.max(xr, axis=0, keepdims=True))
            else:
                xr = x_ref[b, pl.ds(0, C), :].astype(jnp.float32)
                vsum = jnp.sum(xr, axis=0, keepdims=True)
                vmax = jnp.max(xr, axis=0, keepdims=True)
            sum_sc[pl.ds(b, 1), pl.ds(0, HWp)] = vsum
            max_sc[pl.ds(b, 1), pl.ds(0, HWp)] = vmax

        buf_s = sum_sc[...]                       # (Bt, Lpad) sublane-dense planes
        buf_m = max_sc[...]

        # ---- 7x7 conv: per-tap lane roll (XLU) + scalar-broadcast MAC (VPU) on all Bt
        #      batches at once; one column mask per kw; per-kw partials for ILP.
        parts = []
        for kw in range(KSIZE):
            p_even = None
            p_odd = None
            for kh in range(KSIZE):
                s = (kh - PAD) * W + (kw - PAD)   # flat tap offset
                sh = (-s) % Lpad
                rs = pltpu.roll(buf_s, shift=sh, axis=1) if sh else buf_s
                rm = pltpu.roll(buf_m, shift=sh, axis=1) if sh else buf_m
                term = (wvals[0][kh][kw] * rs[:, :HWp]
                        + wvals[1][kh][kw] * rm[:, :HWp])
                if kh % 2 == 0:
                    p_even = term if p_even is None else p_even + term
                else:
                    p_odd = term if p_odd is None else p_odd + term
            part = p_even + p_odd
            if col_mask[kw] is not None:
                part = jnp.where(col_mask[kw], part, 0.0)
            parts.append(part)

        conv = (((parts[0] + parts[1]) + (parts[2] + parts[3]))
                + ((parts[4] + parts[5]) + parts[6]))

        # Single dense (Bt, HWp) unmasked store.
        o_ref[...] = jax.nn.sigmoid(conv).astype(o_ref.dtype)

    return kernel


def _pick_block_batch(B, C, HWp, Lpad, itemsize):
    budget = 4 * 1024 * 1024                      # v7x-safe per-input-block byte budget
    per_b = max(1, C * HWp * itemsize)
    cap = min(B, _MAX_BT, max(1, budget // per_b))
    # Keep the two stacked (bt, Lpad) f32 plane buffers well inside the vreg file.
    while cap > 1 and 2 * cap * Lpad * 4 > 64 * 1024:
        cap -= 1
    # At least two grid steps when B >= 2 so both v7x TensorCores get a tile.
    if B >= 2:
        cap = min(cap, B // 2)
    cap = max(1, cap)
    bt = cap
    while B % bt:                                 # bt must divide B
        bt -= 1
    return bt


def spatial_attention(x, weight):
    """x: (B, C, H, W); weight: (1, 2, 7, 7) conv1 weight (no bias). -> (B, 1, H, W)."""
    B, C, H, W = x.shape
    HW = H * W
    HWp = _round_up(HW, 128)                      # lane-aligned flattened spatial
    Lpad = _round_up(HWp + PAD * W + PAD, 128)    # + halo room (>= HW + 3W + 3)

    # Fold the 1/C of the channel-mean into the avg-channel weights.
    w_scaled = weight.astype(jnp.float32) * jnp.array(
        [1.0 / C, 1.0], jnp.float32).reshape(1, 2, 1, 1)
    w_flat = w_scaled.reshape(-1)                 # (2*7*7,), [in_ch, kh, kw] order

    x2d = x.reshape(B, C, HW)                     # lane-dense view (free reshape)
    if HWp != HW:                                 # pad so stores stay tile-aligned
        x2d = jnp.pad(x2d, ((0, 0), (0, 0), (0, HWp - HW)))

    bt = _pick_block_batch(B, C, HWp, Lpad, x.dtype.itemsize)
    nsteps = B // bt

    out3d = pl.pallas_call(
        _make_kernel(W, bt, C, HWp, Lpad),
        out_shape=jax.ShapeDtypeStruct((nsteps, bt, HWp), x.dtype),
        grid=(nsteps,),
        in_specs=[
            pl.BlockSpec(memory_space=pltpu.MemorySpace.SMEM),     # conv weights
            pl.BlockSpec((bt, C, HWp), lambda i: (i, 0, 0)),       # bt batches / step
        ],
        out_specs=pl.BlockSpec((None, bt, HWp), lambda i: (i, 0, 0)),
        scratch_shapes=[pltpu.VMEM((bt, Lpad), jnp.float32),       # sum/avg plane
                        pltpu.VMEM((bt, Lpad), jnp.float32)],      # max plane
        compiler_params=pltpu.CompilerParams(
            dimension_semantics=("parallel",),    # independent batch tiles (2 TCs on v7x)
            vmem_limit_bytes=32 * 1024 * 1024,
        ),
    )(w_flat, x2d)

    out2d = out3d.reshape(B, HWp)[:, :HW]
    return out2d.reshape(B, 1, H, W)


def reference(x, weight):
    """Pure-JAX reference matching the PyTorch forward."""
    mx = jnp.max(x, axis=1, keepdims=True)
    avg = jnp.mean(x, axis=1, keepdims=True)
    cat = jnp.concatenate([avg, mx], axis=1)      # (B, 2, H, W)
    conv = jax.lax.conv_general_dilated(
        cat, weight, window_strides=(1, 1),
        padding=((PAD, PAD), (PAD, PAD)),
        dimension_numbers=("NCHW", "OIHW", "NCHW"))
    return jax.nn.sigmoid(conv)


if __name__ == "__main__":
    key = jax.random.PRNGKey(0)
    kx, kwt = jax.random.split(key)

    B, C, H, W = 2, 4, 16, 16
    x = jax.random.normal(kx, (B, C, H, W), dtype=jnp.float32)

    # Deterministic Conv2d(2, 1, 7, bias=False) weight init
    # (PyTorch default kaiming-uniform bound = 1/sqrt(fan_in), fan_in = 2*7*7).
    fan_in = 2 * KSIZE * KSIZE
    bound = 1.0 / (fan_in ** 0.5)
    weight = jax.random.uniform(
        kwt, (1, 2, KSIZE, KSIZE), minval=-bound, maxval=bound, dtype=jnp.float32)

    out = spatial_attention(x, weight)
    out = jax.block_until_ready(out)

    ref = reference(x, weight)
    assert out.shape == (B, 1, H, W)
    assert jnp.allclose(out, ref, atol=1e-5, rtol=1e-5), "mismatch vs reference"

    print("KERNEL_OK")
</pallas_src>

<mosaic_0001>
module attributes {stable_mosaic.version = 11 : i64} {
  func.func @kernel(%arg0: i32, %arg1: memref<98xf32, #tpu.memory_space<smem>>, %arg2: memref<1x4x256xf32, #tpu.memory_space<vmem>>, %arg3: memref<1x1x256xf32, #tpu.memory_space<vmem>>, %arg4: memref<1x384xf32, #tpu.memory_space<vmem>>, %arg5: memref<1x384xf32, #tpu.memory_space<vmem>>) attributes {dimension_semantics = [#tpu.dimension_semantics<parallel>], iteration_bounds = array<i64: 2>, scalar_prefetch = 0 : i64, scratch_operands = 2 : i64, tpu.core_type = #tpu.core_type<tc>, window_params = [{transform_indices = @transform_0, window_bounds = array<i64: 98>}, {transform_indices = @transform_1, window_bounds = array<i64: 1, 4, 256>}, {transform_indices = @transform_2, window_bounds = array<i64: 1, 1, 256>}]} {
    %c0 = arith.constant 0 : index
    %0 = memref.load %arg1[%c0] : memref<98xf32, #tpu.memory_space<smem>>
    %c1 = arith.constant 1 : index
    %1 = memref.load %arg1[%c1] : memref<98xf32, #tpu.memory_space<smem>>
    %c2 = arith.constant 2 : index
    %2 = memref.load %arg1[%c2] : memref<98xf32, #tpu.memory_space<smem>>
    %c3 = arith.constant 3 : index
    %3 = memref.load %arg1[%c3] : memref<98xf32, #tpu.memory_space<smem>>
    %c4 = arith.constant 4 : index
    %4 = memref.load %arg1[%c4] : memref<98xf32, #tpu.memory_space<smem>>
    %c5 = arith.constant 5 : index
    %5 = memref.load %arg1[%c5] : memref<98xf32, #tpu.memory_space<smem>>
    %c6 = arith.constant 6 : index
    %6 = memref.load %arg1[%c6] : memref<98xf32, #tpu.memory_space<smem>>
    %c7 = arith.constant 7 : index
    %7 = memref.load %arg1[%c7] : memref<98xf32, #tpu.memory_space<smem>>
    %c8 = arith.constant 8 : index
    %8 = memref.load %arg1[%c8] : memref<98xf32, #tpu.memory_space<smem>>
    %c9 = arith.constant 9 : index
    %9 = memref.load %arg1[%c9] : memref<98xf32, #tpu.memory_space<smem>>
    %c10 = arith.constant 10 : index
    %10 = memref.load %arg1[%c10] : memref<98xf32, #tpu.memory_space<smem>>
    %c11 = arith.constant 11 : index
    %11 = memref.load %arg1[%c11] : memref<98xf32, #tpu.memory_space<smem>>
    %c12 = arith.constant 12 : index
    %12 = memref.load %arg1[%c12] : memref<98xf32, #tpu.memory_space<smem>>
    %c13 = arith.constant 13 : index
    %13 = memref.load %arg1[%c13] : memref<98xf32, #tpu.memory_space<smem>>
    %c14 = arith.constant 14 : index
    %14 = memref.load %arg1[%c14] : memref<98xf32, #tpu.memory_space<smem>>
    %c15 = arith.constant 15 : index
    %15 = memref.load %arg1[%c15] : memref<98xf32, #tpu.memory_space<smem>>
    %c16 = arith.constant 16 : index
    %16 = memref.load %arg1[%c16] : memref<98xf32, #tpu.memory_space<smem>>
    %c17 = arith.constant 17 : index
    %17 = memref.load %arg1[%c17] : memref<98xf32, #tpu.memory_space<smem>>
    %c18 = arith.constant 18 : index
    %18 = memref.load %arg1[%c18] : memref<98xf32, #tpu.memory_space<smem>>
    %c19 = arith.constant 19 : index
    %19 = memref.load %arg1[%c19] : memref<98xf32, #tpu.memory_space<smem>>
    %c20 = arith.constant 20 : index
    %20 = memref.load %arg1[%c20] : memref<98xf32, #tpu.memory_space<smem>>
    %c21 = arith.constant 21 : index
    %21 = memref.load %arg1[%c21] : memref<98xf32, #tpu.memory_space<smem>>
    %c22 = arith.constant 22 : index
    %22 = memref.load %arg1[%c22] : memref<98xf32, #tpu.memory_space<smem>>
    %c23 = arith.constant 23 : index
    %23 = memref.load %arg1[%c23] : memref<98xf32, #tpu.memory_space<smem>>
    %c24 = arith.constant 24 : index
    %24 = memref.load %arg1[%c24] : memref<98xf32, #tpu.memory_space<smem>>
    %c25 = arith.constant 25 : index
    %25 = memref.load %arg1[%c25] : memref<98xf32, #tpu.memory_space<smem>>
    %c26 = arith.constant 26 : index
    %26 = memref.load %arg1[%c26] : memref<98xf32, #tpu.memory_space<smem>>
    %c27 = arith.constant 27 : index
    %27 = memref.load %arg1[%c27] : memref<98xf32, #tpu.memory_space<smem>>
    %c28 = arith.constant 28 : index
    %28 = memref.load %arg1[%c28] : memref<98xf32, #tpu.memory_space<smem>>
    %c29 = arith.constant 29 : index
    %29 = memref.load %arg1[%c29] : memref<98xf32, #tpu.memory_space<smem>>
    %c30 = arith.constant 30 : index
    %30 = memref.load %arg1[%c30] : memref<98xf32, #tpu.memory_space<smem>>
    %c31 = arith.constant 31 : index
    %31 = memref.load %arg1[%c31] : memref<98xf32, #tpu.memory_space<smem>>
    %c32 = arith.constant 32 : index
    %32 = memref.load %arg1[%c32] : memref<98xf32, #tpu.memory_space<smem>>
    %c33 = arith.constant 33 : index
    %33 = memref.load %arg1[%c33] : memref<98xf32, #tpu.memory_space<smem>>
    %c34 = arith.constant 34 : index
    %34 = memref.load %arg1[%c34] : memref<98xf32, #tpu.memory_space<smem>>
    %c35 = arith.constant 35 : index
    %35 = memref.load %arg1[%c35] : memref<98xf32, #tpu.memory_space<smem>>
    %c36 = arith.constant 36 : index
    %36 = memref.load %arg1[%c36] : memref<98xf32, #tpu.memory_space<smem>>
    %c37 = arith.constant 37 : index
    %37 = memref.load %arg1[%c37] : memref<98xf32, #tpu.memory_space<smem>>
    %c38 = arith.constant 38 : index
    %38 = memref.load %arg1[%c38] : memref<98xf32, #tpu.memory_space<smem>>
    %c39 = arith.constant 39 : index
    %39 = memref.load %arg1[%c39] : memref<98xf32, #tpu.memory_space<smem>>
    %c40 = arith.constant 40 : index
    %40 = memref.load %arg1[%c40] : memref<98xf32, #tpu.memory_space<smem>>
    %c41 = arith.constant 41 : index
    %41 = memref.load %arg1[%c41] : memref<98xf32, #tpu.memory_space<smem>>
    %c42 = arith.constant 42 : index
    %42 = memref.load %arg1[%c42] : memref<98xf32, #tpu.memory_space<smem>>
    %c43 = arith.constant 43 : index
    %43 = memref.load %arg1[%c43] : memref<98xf32, #tpu.memory_space<smem>>
    %c44 = arith.constant 44 : index
    %44 = memref.load %arg1[%c44] : memref<98xf32, #tpu.memory_space<smem>>
    %c45 = arith.constant 45 : index
    %45 = memref.load %arg1[%c45] : memref<98xf32, #tpu.memory_space<smem>>
    %c46 = arith.constant 46 : index
    %46 = memref.load %arg1[%c46] : memref<98xf32, #tpu.memory_space<smem>>
    %c47 = arith.constant 47 : index
    %47 = memref.load %arg1[%c47] : memref<98xf32, #tpu.memory_space<smem>>
    %c48 = arith.constant 48 : index
    %48 = memref.load %arg1[%c48] : memref<98xf32, #tpu.memory_space<smem>>
    %c49 = arith.constant 49 : index
    %49 = memref.load %arg1[%c49] : memref<98xf32, #tpu.memory_space<smem>>
    %c50 = arith.constant 50 : index
    %50 = memref.load %arg1[%c50] : memref<98xf32, #tpu.memory_space<smem>>
    %c51 = arith.constant 51 : index
    %51 = memref.load %arg1[%c51] : memref<98xf32, #tpu.memory_space<smem>>
    %c52 = arith.constant 52 : index
    %52 = memref.load %arg1[%c52] : memref<98xf32, #tpu.memory_space<smem>>
    %c53 = arith.constant 53 : index
    %53 = memref.load %arg1[%c53] : memref<98xf32, #tpu.memory_space<smem>>
    %c54 = arith.constant 54 : index
    %54 = memref.load %arg1[%c54] : memref<98xf32, #tpu.memory_space<smem>>
    %c55 = arith.constant 55 : index
    %55 = memref.load %arg1[%c55] : memref<98xf32, #tpu.memory_space<smem>>
    %c56 = arith.constant 56 : index
    %56 = memref.load %arg1[%c56] : memref<98xf32, #tpu.memory_space<smem>>
    %c57 = arith.constant 57 : index
    %57 = memref.load %arg1[%c57] : memref<98xf32, #tpu.memory_space<smem>>
    %c58 = arith.constant 58 : index
    %58 = memref.load %arg1[%c58] : memref<98xf32, #tpu.memory_space<smem>>
    %c59 = arith.constant 59 : index
    %59 = memref.load %arg1[%c59] : memref<98xf32, #tpu.memory_space<smem>>
    %c60 = arith.constant 60 : index
    %60 = memref.load %arg1[%c60] : memref<98xf32, #tpu.memory_space<smem>>
    %c61 = arith.constant 61 : index
    %61 = memref.load %arg1[%c61] : memref<98xf32, #tpu.memory_space<smem>>
    %c62 = arith.constant 62 : index
    %62 = memref.load %arg1[%c62] : memref<98xf32, #tpu.memory_space<smem>>
    %c63 = arith.constant 63 : index
    %63 = memref.load %arg1[%c63] : memref<98xf32, #tpu.memory_space<smem>>
    %c64 = arith.constant 64 : index
    %64 = memref.load %arg1[%c64] : memref<98xf32, #tpu.memory_space<smem>>
    %c65 = arith.constant 65 : index
    %65 = memref.load %arg1[%c65] : memref<98xf32, #tpu.memory_space<smem>>
    %c66 = arith.constant 66 : index
    %66 = memref.load %arg1[%c66] : memref<98xf32, #tpu.memory_space<smem>>
    %c67 = arith.constant 67 : index
    %67 = memref.load %arg1[%c67] : memref<98xf32, #tpu.memory_space<smem>>
    %c68 = arith.constant 68 : index
    %68 = memref.load %arg1[%c68] : memref<98xf32, #tpu.memory_space<smem>>
    %c69 = arith.constant 69 : index
    %69 = memref.load %arg1[%c69] : memref<98xf32, #tpu.memory_space<smem>>
    %c70 = arith.constant 70 : index
    %70 = memref.load %arg1[%c70] : memref<98xf32, #tpu.memory_space<smem>>
    %c71 = arith.constant 71 : index
    %71 = memref.load %arg1[%c71] : memref<98xf32, #tpu.memory_space<smem>>
    %c72 = arith.constant 72 : index
    %72 = memref.load %arg1[%c72] : memref<98xf32, #tpu.memory_space<smem>>
    %c73 = arith.constant 73 : index
    %73 = memref.load %arg1[%c73] : memref<98xf32, #tpu.memory_space<smem>>
    %c74 = arith.constant 74 : index
    %74 = memref.load %arg1[%c74] : memref<98xf32, #tpu.memory_space<smem>>
    %c75 = arith.constant 75 : index
    %75 = memref.load %arg1[%c75] : memref<98xf32, #tpu.memory_space<smem>>
    %c76 = arith.constant 76 : index
    %76 = memref.load %arg1[%c76] : memref<98xf32, #tpu.memory_space<smem>>
    %c77 = arith.constant 77 : index
    %77 = memref.load %arg1[%c77] : memref<98xf32, #tpu.memory_space<smem>>
    %c78 = arith.constant 78 : index
    %78 = memref.load %arg1[%c78] : memref<98xf32, #tpu.memory_space<smem>>
    %c79 = arith.constant 79 : index
    %79 = memref.load %arg1[%c79] : memref<98xf32, #tpu.memory_space<smem>>
    %c80 = arith.constant 80 : index
    %80 = memref.load %arg1[%c80] : memref<98xf32, #tpu.memory_space<smem>>
    %c81 = arith.constant 81 : index
    %81 = memref.load %arg1[%c81] : memref<98xf32, #tpu.memory_space<smem>>
    %c82 = arith.constant 82 : index
    %82 = memref.load %arg1[%c82] : memref<98xf32, #tpu.memory_space<smem>>
    %c83 = arith.constant 83 : index
    %83 = memref.load %arg1[%c83] : memref<98xf32, #tpu.memory_space<smem>>
    %c84 = arith.constant 84 : index
    %84 = memref.load %arg1[%c84] : memref<98xf32, #tpu.memory_space<smem>>
    %c85 = arith.constant 85 : index
    %85 = memref.load %arg1[%c85] : memref<98xf32, #tpu.memory_space<smem>>
    %c86 = arith.constant 86 : index
    %86 = memref.load %arg1[%c86] : memref<98xf32, #tpu.memory_space<smem>>
    %c87 = arith.constant 87 : index
    %87 = memref.load %arg1[%c87] : memref<98xf32, #tpu.memory_space<smem>>
    %c88 = arith.constant 88 : index
    %88 = memref.load %arg1[%c88] : memref<98xf32, #tpu.memory_space<smem>>
    %c89 = arith.constant 89 : index
    %89 = memref.load %arg1[%c89] : memref<98xf32, #tpu.memory_space<smem>>
    %c90 = arith.constant 90 : index
    %90 = memref.load %arg1[%c90] : memref<98xf32, #tpu.memory_space<smem>>
    %c91 = arith.constant 91 : index
    %91 = memref.load %arg1[%c91] : memref<98xf32, #tpu.memory_space<smem>>
    %c92 = arith.constant 92 : index
    %92 = memref.load %arg1[%c92] : memref<98xf32, #tpu.memory_space<smem>>
    %c93 = arith.constant 93 : index
    %93 = memref.load %arg1[%c93] : memref<98xf32, #tpu.memory_space<smem>>
    %c94 = arith.constant 94 : index
    %94 = memref.load %arg1[%c94] : memref<98xf32, #tpu.memory_space<smem>>
    %c95 = arith.constant 95 : index
    %95 = memref.load %arg1[%c95] : memref<98xf32, #tpu.memory_space<smem>>
    %c96 = arith.constant 96 : index
    %96 = memref.load %arg1[%c96] : memref<98xf32, #tpu.memory_space<smem>>
    %c97 = arith.constant 97 : index
    %97 = memref.load %arg1[%c97] : memref<98xf32, #tpu.memory_space<smem>>
    %98 = tpu.iota {dimensions = array<i32: 1>} : vector<1x256xi32>
    %c16_i32 = arith.constant 16 : i32
    %c0_i32 = arith.constant 0 : i32
    %99 = arith.cmpi eq, %c16_i32, %c0_i32 : i32
    %c1_i32 = arith.constant 1 : i32
    %100 = arith.select %99, %c1_i32, %c16_i32 : i32
    %101 = vector.broadcast %100 : i32 to vector<1x256xi32>
    %102 = arith.remsi %98, %101 : vector<1x256xi32>
    %c0_i32_0 = arith.constant 0 : i32
    %103 = vector.broadcast %c0_i32_0 : i32 to vector<1x256xi32>
    %104 = arith.cmpi ne, %102, %103 : vector<1x256xi32>
    %c0_i32_1 = arith.constant 0 : i32
    %105 = vector.broadcast %c0_i32_1 : i32 to vector<1x256xi32>
    %106 = arith.cmpi slt, %102, %105 : vector<1x256xi32>
    %c0_i32_2 = arith.constant 0 : i32
    %107 = arith.cmpi slt, %100, %c0_i32_2 : i32
    %108 = vector.broadcast %107 : i1 to vector<1x256xi1>
    %109 = vector.broadcast %108 : vector<1x256xi1> to vector<1x256xi1>
    %110 = arith.xori %106, %109 : vector<1x256xi1>
    %111 = arith.andi %110, %104 : vector<1x256xi1>
    %112 = vector.broadcast %100 : i32 to vector<1x256xi32>
    %113 = arith.addi %102, %112 : vector<1x256xi32>
    %114 = arith.select %111, %113, %102 : vector<1x256xi1>, vector<1x256xi32>
    %c3_i32 = arith.constant 3 : i32
    %115 = vector.broadcast %c3_i32 : i32 to vector<1x256xi32>
    %116 = arith.cmpi sge, %114, %115 : vector<1x256xi32>
    %c16_i32_3 = arith.constant 16 : i32
    %117 = vector.broadcast %c16_i32_3 : i32 to vector<1x256xi32>
    %118 = arith.cmpi slt, %114, %117 : vector<1x256xi32>
    %119 = arith.andi %116, %118 : vector<1x256xi1>
    %c2_i32 = arith.constant 2 : i32
    %120 = vector.broadcast %c2_i32 : i32 to vector<1x256xi32>
    %121 = arith.cmpi sge, %114, %120 : vector<1x256xi32>
    %c16_i32_4 = arith.constant 16 : i32
    %122 = vector.broadcast %c16_i32_4 : i32 to vector<1x256xi32>
    %123 = arith.cmpi slt, %114, %122 : vector<1x256xi32>
    %124 = arith.andi %121, %123 : vector<1x256xi1>
    %c1_i32_5 = arith.constant 1 : i32
    %125 = vector.broadcast %c1_i32_5 : i32 to vector<1x256xi32>
    %126 = arith.cmpi sge, %114, %125 : vector<1x256xi32>
    %c16_i32_6 = arith.constant 16 : i32
    %127 = vector.broadcast %c16_i32_6 : i32 to vector<1x256xi32>
    %128 = arith.cmpi slt, %114, %127 : vector<1x256xi32>
    %129 = arith.andi %126, %128 : vector<1x256xi1>
    %c0_i32_7 = arith.constant 0 : i32
    %130 = vector.broadcast %c0_i32_7 : i32 to vector<1x256xi32>
    %131 = arith.cmpi sge, %114, %130 : vector<1x256xi32>
    %c15_i32 = arith.constant 15 : i32
    %132 = vector.broadcast %c15_i32 : i32 to vector<1x256xi32>
    %133 = arith.cmpi slt, %114, %132 : vector<1x256xi32>
    %134 = arith.andi %131, %133 : vector<1x256xi1>
    %c0_i32_8 = arith.constant 0 : i32
    %135 = vector.broadcast %c0_i32_8 : i32 to vector<1x256xi32>
    %136 = arith.cmpi sge, %114, %135 : vector<1x256xi32>
    %c14_i32 = arith.constant 14 : i32
    %137 = vector.broadcast %c14_i32 : i32 to vector<1x256xi32>
    %138 = arith.cmpi slt, %114, %137 : vector<1x256xi32>
    %139 = arith.andi %136, %138 : vector<1x256xi1>
    %c0_i32_9 = arith.constant 0 : i32
    %140 = vector.broadcast %c0_i32_9 : i32 to vector<1x256xi32>
    %141 = arith.cmpi sge, %114, %140 : vector<1x256xi32>
    %c13_i32 = arith.constant 13 : i32
    %142 = vector.broadcast %c13_i32 : i32 to vector<1x256xi32>
    %143 = arith.cmpi slt, %114, %142 : vector<1x256xi32>
    %144 = arith.andi %141, %143 : vector<1x256xi1>
    %cst = arith.constant 0.000000e+00 : f32
    %145 = vector.broadcast %cst : f32 to vector<1x128xf32>
    %c0_10 = arith.constant 0 : index
    %c256 = arith.constant 256 : index
    %146 = vector.load %arg4[%c0_10, %c256] : memref<1x384xf32, #tpu.memory_space<vmem>>, vector<1x128xf32>
    tpu.vector_store %arg4[%c0_10, %c256], %145 {strides = array<i32>} : memref<1x384xf32, #tpu.memory_space<vmem>>, vector<1x128xf32>,
    %c0_11 = arith.constant 0 : index
    %c256_12 = arith.constant 256 : index
    %147 = vector.load %arg5[%c0_11, %c256_12] : memref<1x384xf32, #tpu.memory_space<vmem>>, vector<1x128xf32>
    tpu.vector_store %arg5[%c0_11, %c256_12], %145 {strides = array<i32>} : memref<1x384xf32, #tpu.memory_space<vmem>>, vector<1x128xf32>,
    %c0_13 = arith.constant 0 : index
    %c0_14 = arith.constant 0 : index
    %c0_15 = arith.constant 0 : index
    %148 = vector.load %arg2[%c0_13, %c0_14, %c0_15] : memref<1x4x256xf32, #tpu.memory_space<vmem>>, vector<1x4x256xf32>
    %149 = vector.shape_cast %148 : vector<1x4x256xf32> to vector<4x256xf32>
    %cst_16 = arith.constant dense<0.000000e+00> : vector<256xf32>
    %150 = vector.multi_reduction <add>, %149, %cst_16 [0] : vector<4x256xf32> to vector<256xf32>
    %151 = vector.shape_cast %150 : vector<256xf32> to vector<1x256xf32>
    %cst_17 = arith.constant dense<0xFF800000> : vector<256xf32>
    %152 = vector.multi_reduction <maximumf>, %149, %cst_17 [0] : vector<4x256xf32> to vector<256xf32>
    %153 = vector.shape_cast %152 : vector<256xf32> to vector<1x256xf32>
    %c0_18 = arith.constant 0 : index
    %c0_19 = arith.constant 0 : index
    %154 = vector.load %arg4[%c0_18, %c0_19] : memref<1x384xf32, #tpu.memory_space<vmem>>, vector<1x256xf32>
    tpu.vector_store %arg4[%c0_18, %c0_19], %151 {strides = array<i32>} : memref<1x384xf32, #tpu.memory_space<vmem>>, vector<1x256xf32>,
    %c0_20 = arith.constant 0 : index
    %c0_21 = arith.constant 0 : index
    %155 = vector.load %arg5[%c0_20, %c0_21] : memref<1x384xf32, #tpu.memory_space<vmem>>, vector<1x256xf32>
    tpu.vector_store %arg5[%c0_20, %c0_21], %153 {strides = array<i32>} : memref<1x384xf32, #tpu.memory_space<vmem>>, vector<1x256xf32>,
    %c0_22 = arith.constant 0 : index
    %c0_23 = arith.constant 0 : index
    %156 = vector.load %arg4[%c0_22, %c0_23] : memref<1x384xf32, #tpu.memory_space<vmem>>, vector<1x384xf32>
    %c0_24 = arith.constant 0 : index
    %c0_25 = arith.constant 0 : index
    %157 = vector.load %arg5[%c0_24, %c0_25] : memref<1x384xf32, #tpu.memory_space<vmem>>, vector<1x384xf32>
    %c51_i32 = arith.constant 51 : i32
    %158 = tpu.dynamic_rotate %156 by %c51_i32 dim 1 : vector<1x384xf32>, i32 -> vector<1x384xf32>
    %c51_i32_26 = arith.constant 51 : i32
    %159 = tpu.dynamic_rotate %157 by %c51_i32_26 dim 1 : vector<1x384xf32>, i32 -> vector<1x384xf32>
    %160 = vector.extract_strided_slice %158 {offsets = [0, 0], sizes = [1, 256], strides = [1, 1]} : vector<1x384xf32> to vector<1x256xf32>
    %161 = vector.broadcast %0 : f32 to vector<1x256xf32>
    %162 = arith.mulf %161, %160 : vector<1x256xf32>
    %163 = vector.extract_strided_slice %159 {offsets = [0, 0], sizes = [1, 256], strides = [1, 1]} : vector<1x384xf32> to vector<1x256xf32>
    %164 = vector.broadcast %49 : f32 to vector<1x256xf32>
    %165 = arith.mulf %164, %163 : vector<1x256xf32>
    %166 = arith.addf %162, %165 : vector<1x256xf32>
    %c35_i32 = arith.constant 35 : i32
    %167 = tpu.dynamic_rotate %156 by %c35_i32 dim 1 : vector<1x384xf32>, i32 -> vector<1x384xf32>
    %c35_i32_27 = arith.constant 35 : i32
    %168 = tpu.dynamic_rotate %157 by %c35_i32_27 dim 1 : vector<1x384xf32>, i32 -> vector<1x384xf32>
    %169 = vector.extract_strided_slice %167 {offsets = [0, 0], sizes = [1, 256], strides = [1, 1]} : vector<1x384xf32> to vector<1x256xf32>
    %170 = vector.broadcast %7 : f32 to vector<1x256xf32>
    %171 = arith.mulf %170, %169 : vector<1x256xf32>
    %172 = vector.extract_strided_slice %168 {offsets = [0, 0], sizes = [1, 256], strides = [1, 1]} : vector<1x384xf32> to vector<1x256xf32>
    %173 = vector.broadcast %56 : f32 to vector<1x256xf32>
    %174 = arith.mulf %173, %172 : vector<1x256xf32>
    %175 = arith.addf %171, %174 : vector<1x256xf32>
    %c19_i32 = arith.constant 19 : i32
    %176 = tpu.dynamic_rotate %156 by %c19_i32 dim 1 : vector<1x384xf32>, i32 -> vector<1x384xf32>
    %c19_i32_28 = arith.constant 19 : i32
    %177 = tpu.dynamic_rotate %157 by %c19_i32_28 dim 1 : vector<1x384xf32>, i32 -> vector<1x384xf32>
    %178 = vector.extract_strided_slice %176 {offsets = [0, 0], sizes = [1, 256], strides = [1, 1]} : vector<1x384xf32> to vector<1x256xf32>
    %179 = vector.broadcast %14 : f32 to vector<1x256xf32>
    %180 = arith.mulf %179, %178 : vector<1x256xf32>
    %181 = vector.extract_strided_slice %177 {offsets = [0, 0], sizes = [1, 256], strides = [1, 1]} : vector<1x384xf32> to vector<1x256xf32>
    %182 = vector.broadcast %63 : f32 to vector<1x256xf32>
    %183 = arith.mulf %182, %181 : vector<1x256xf32>
    %184 = arith.addf %180, %183 : vector<1x256xf32>
    %185 = arith.addf %166, %184 : vector<1x256xf32>
    %c3_i32_29 = arith.constant 3 : i32
    %186 = tpu.dynamic_rotate %156 by %c3_i32_29 dim 1 : vector<1x384xf32>, i32 -> vector<1x384xf32>
    %c3_i32_30 = arith.constant 3 : i32
    %187 = tpu.dynamic_rotate %157 by %c3_i32_30 dim 1 : vector<1x384xf32>, i32 -> vector<1x384xf32>
    %188 = vector.extract_strided_slice %186 {offsets = [0, 0], sizes = [1, 256], strides = [1, 1]} : vector<1x384xf32> to vector<1x256xf32>
    %189 = vector.broadcast %21 : f32 to vector<1x256xf32>
    %190 = arith.mulf %189, %188 : vector<1x256xf32>
    %191 = vector.extract_strided_slice %187 {offsets = [0, 0], sizes = [1, 256], strides = [1, 1]} : vector<1x384xf32> to vector<1x256xf32>
    %192 = vector.broadcast %70 : f32 to vector<1x256xf32>
    %193 = arith.mulf %192, %191 : vector<1x256xf32>
    %194 = arith.addf %190, %193 : vector<1x256xf32>
    %195 = arith.addf %175, %194 : vector<1x256xf32>
    %c371_i32 = arith.constant 371 : i32
    %196 = tpu.dynamic_rotate %156 by %c371_i32 dim 1 : vector<1x384xf32>, i32 -> vector<1x384xf32>
    %c371_i32_31 = arith.constant 371 : i32
    %197 = tpu.dynamic_rotate %157 by %c371_i32_31 dim 1 : vector<1x384xf32>, i32 -> vector<1x384xf32>
    %198 = vector.extract_strided_slice %196 {offsets = [0, 0], sizes = [1, 256], strides = [1, 1]} : vector<1x384xf32> to vector<1x256xf32>
    %199 = vector.broadcast %28 : f32 to vector<1x256xf32>
    %200 = arith.mulf %199, %198 : vector<1x256xf32>
    %201 = vector.extract_strided_slice %197 {offsets = [0, 0], sizes = [1, 256], strides = [1, 1]} : vector<1x384xf32> to vector<1x256xf32>
    %202 = vector.broadcast %77 : f32 to vector<1x256xf32>
    %203 = arith.mulf %202, %201 : vector<1x256xf32>
    %204 = arith.addf %200, %203 : vector<1x256xf32>
    %205 = arith.addf %185, %204 : vector<1x256xf32>
    %c355_i32 = arith.constant 355 : i32
    %206 = tpu.dynamic_rotate %156 by %c355_i32 dim 1 : vector<1x384xf32>, i32 -> vector<1x384xf32>
    %c355_i32_32 = arith.constant 355 : i32
    %207 = tpu.dynamic_rotate %157 by %c355_i32_32 dim 1 : vector<1x384xf32>, i32 -> vector<1x384xf32>
    %208 = vector.extract_strided_slice %206 {offsets = [0, 0], sizes = [1, 256], strides = [1, 1]} : vector<1x384xf32> to vector<1x256xf32>
    %209 = vector.broadcast %35 : f32 to vector<1x256xf32>
    %210 = arith.mulf %209, %208 : vector<1x256xf32>
    %211 = vector.extract_strided_slice %207 {offsets = [0, 0], sizes = [1, 256], strides = [1, 1]} : vector<1x384xf32> to vector<1x256xf32>
    %212 = vector.broadcast %84 : f32 to vector<1x256xf32>
    %213 = arith.mulf %212, %211 : vector<1x256xf32>
    %214 = arith.addf %210, %213 : vector<1x256xf32>
    %215 = arith.addf %195, %214 : vector<1x256xf32>
    %c339_i32 = arith.constant 339 : i32
    %216 = tpu.dynamic_rotate %156 by %c339_i32 dim 1 : vector<1x384xf32>, i32 -> vector<1x384xf32>
    %c339_i32_33 = arith.constant 339 : i32
    %217 = tpu.dynamic_rotate %157 by %c339_i32_33 dim 1 : vector<1x384xf32>, i32 -> vector<1x384xf32>
    %218 = vector.extract_strided_slice %216 {offsets = [0, 0], sizes = [1, 256], strides = [1, 1]} : vector<1x384xf32> to vector<1x256xf32>
    %219 = vector.broadcast %42 : f32 to vector<1x256xf32>
    %220 = arith.mulf %219, %218 : vector<1x256xf32>
    %221 = vector.extract_strided_slice %217 {offsets = [0, 0], sizes = [1, 256], strides = [1, 1]} : vector<1x384xf32> to vector<1x256xf32>
    %222 = vector.broadcast %91 : f32 to vector<1x256xf32>
    %223 = arith.mulf %222, %221 : vector<1x256xf32>
    %224 = arith.addf %220, %223 : vector<1x256xf32>
    %225 = arith.addf %205, %224 : vector<1x256xf32>
    %226 = arith.addf %225, %215 : vector<1x256xf32>
    %cst_34 = arith.constant 0.000000e+00 : f32
    %227 = vector.broadcast %cst_34 : f32 to vector<1x256xf32>
    %228 = arith.select %119, %226, %227 : vector<1x256xi1>, vector<1x256xf32>
    %c50_i32 = arith.constant 50 : i32
    %229 = tpu.dynamic_rotate %156 by %c50_i32 dim 1 : vector<1x384xf32>, i32 -> vector<1x384xf32>
    %c50_i32_35 = arith.constant 50 : i32
    %230 = tpu.dynamic_rotate %157 by %c50_i32_35 dim 1 : vector<1x384xf32>, i32 -> vector<1x384xf32>
    %231 = vector.extract_strided_slice %229 {offsets = [0, 0], sizes = [1, 256], strides = [1, 1]} : vector<1x384xf32> to vector<1x256xf32>
    %232 = vector.broadcast %1 : f32 to vector<1x256xf32>
    %233 = arith.mulf %232, %231 : vector<1x256xf32>
    %234 = vector.extract_strided_slice %230 {offsets = [0, 0], sizes = [1, 256], strides = [1, 1]} : vector<1x384xf32> to vector<1x256xf32>
    %235 = vector.broadcast %50 : f32 to vector<1x256xf32>
    %236 = arith.mulf %235, %234 : vector<1x256xf32>
    %237 = arith.addf %233, %236 : vector<1x256xf32>
    %c34_i32 = arith.constant 34 : i32
    %238 = tpu.dynamic_rotate %156 by %c34_i32 dim 1 : vector<1x384xf32>, i32 -> vector<1x384xf32>
    %c34_i32_36 = arith.constant 34 : i32
    %239 = tpu.dynamic_rotate %157 by %c34_i32_36 dim 1 : vector<1x384xf32>, i32 -> vector<1x384xf32>
    %240 = vector.extract_strided_slice %238 {offsets = [0, 0], sizes = [1, 256], strides = [1, 1]} : vector<1x384xf32> to vector<1x256xf32>
    %241 = vector.broadcast %8 : f32 to vector<1x256xf32>
    %242 = arith.mulf %241, %240 : vector<1x256xf32>
    %243 = vector.extract_strided_slice %239 {offsets = [0, 0], sizes = [1, 256], strides = [1, 1]} : vector<1x384xf32> to vector<1x256xf32>
    %244 = vector.broadcast %57 : f32 to vector<1x256xf32>
    %245 = arith.mulf %244, %243 : vector<1x256xf32>
    %246 = arith.addf %242, %245 : vector<1x256xf32>
    %c18_i32 = arith.constant 18 : i32
    %247 = tpu.dynamic_rotate %156 by %c18_i32 dim 1 : vector<1x384xf32>, i32 -> vector<1x384xf32>
    %c18_i32_37 = arith.constant 18 : i32
    %248 = tpu.dynamic_rotate %157 by %c18_i32_37 dim 1 : vector<1x384xf32>, i32 -> vector<1x384xf32>
    %249 = vector.extract_strided_slice %247 {offsets = [0, 0], sizes = [1, 256], strides = [1, 1]} : vector<1x384xf32> to vector<1x256xf32>
    %250 = vector.broadcast %15 : f32 to vector<1x256xf32>
    %251 = arith.mulf %250, %249 : vector<1x256xf32>
    %252 = vector.extract_strided_slice %248 {offsets = [0, 0], sizes = [1, 256], strides = [1, 1]} : vector<1x384xf32> to vector<1x256xf32>
    %253 = vector.broadcast %64 : f32 to vector<1x256xf32>
    %254 = arith.mulf %253, %252 : vector<1x256xf32>
    %255 = arith.addf %251, %254 : vector<1x256xf32>
    %256 = arith.addf %237, %255 : vector<1x256xf32>
    %c2_i32_38 = arith.constant 2 : i32
    %257 = tpu.dynamic_rotate %156 by %c2_i32_38 dim 1 : vector<1x384xf32>, i32 -> vector<1x384xf32>
    %c2_i32_39 = arith.constant 2 : i32
    %258 = tpu.dynamic_rotate %157 by %c2_i32_39 dim 1 : vector<1x384xf32>, i32 -> vector<1x384xf32>
    %259 = vector.extract_strided_slice %257 {offsets = [0, 0], sizes = [1, 256], strides = [1, 1]} : vector<1x384xf32> to vector<1x256xf32>
    %260 = vector.broadcast %22 : f32 to vector<1x256xf32>
    %261 = arith.mulf %260, %259 : vector<1x256xf32>
    %262 = vector.extract_strided_slice %258 {offsets = [0, 0], sizes = [1, 256], strides = [1, 1]} : vector<1x384xf32> to vector<1x256xf32>
    %263 = vector.broadcast %71 : f32 to vector<1x256xf32>
    %264 = arith.mulf %263, %262 : vector<1x256xf32>
    %265 = arith.addf %261, %264 : vector<1x256xf32>
    %266 = arith.addf %246, %265 : vector<1x256xf32>
    %c370_i32 = arith.constant 370 : i32
    %267 = tpu.dynamic_rotate %156 by %c370_i32 dim 1 : vector<1x384xf32>, i32 -> vector<1x384xf32>
    %c370_i32_40 = arith.constant 370 : i32
    %268 = tpu.dynamic_rotate %157 by %c370_i32_40 dim 1 : vector<1x384xf32>, i32 -> vector<1x384xf32>
    %269 = vector.extract_strided_slice %267 {offsets = [0, 0], sizes = [1, 256], strides = [1, 1]} : vector<1x384xf32> to vector<1x256xf32>
    %270 = vector.broadcast %29 : f32 to vector<1x256xf32>
    %271 = arith.mulf %270, %269 : vector<1x256xf32>
    %272 = vector.extract_strided_slice %268 {offsets = [0, 0], sizes = [1, 256], strides = [1, 1]} : vector<1x384xf32> to vector<1x256xf32>
    %273 = vector.broadcast %78 : f32 to vector<1x256xf32>
    %274 = arith.mulf %273, %272 : vector<1x256xf32>
    %275 = arith.addf %271, %274 : vector<1x256xf32>
    %276 = arith.addf %256, %275 : vector<1x256xf32>
    %c354_i32 = arith.constant 354 : i32
    %277 = tpu.dynamic_rotate %156 by %c354_i32 dim 1 : vector<1x384xf32>, i32 -> vector<1x384xf32>
    %c354_i32_41 = arith.constant 354 : i32
    %278 = tpu.dynamic_rotate %157 by %c354_i32_41 dim 1 : vector<1x384xf32>, i32 -> vector<1x384xf32>
    %279 = vector.extract_strided_slice %277 {offsets = [0, 0], sizes = [1, 256], strides = [1, 1]} : vector<1x384xf32> to vector<1x256xf32>
    %280 = vector.broadcast %36 : f32 to vector<1x256xf32>
    %281 = arith.mulf %280, %279 : vector<1x256xf32>
    %282 = vector.extract_strided_slice %278 {offsets = [0, 0], sizes = [1, 256], strides = [1, 1]} : vector<1x384xf32> to vector<1x256xf32>
    %283 = vector.broadcast %85 : f32 to vector<1x256xf32>
    %284 = arith.mulf %283, %282 : vector<1x256xf32>
    %285 = arith.addf %281, %284 : vector<1x256xf32>
    %286 = arith.addf %266, %285 : vector<1x256xf32>
    %c338_i32 = arith.constant 338 : i32
    %287 = tpu.dynamic_rotate %156 by %c338_i32 dim 1 : vector<1x384xf32>, i32 -> vector<1x384xf32>
    %c338_i32_42 = arith.constant 338 : i32
    %288 = tpu.dynamic_rotate %157 by %c338_i32_42 dim 1 : vector<1x384xf32>, i32 -> vector<1x384xf32>
    %289 = vector.extract_strided_slice %287 {offsets = [0, 0], sizes = [1, 256], strides = [1, 1]} : vector<1x384xf32> to vector<1x256xf32>
    %290 = vector.broadcast %43 : f32 to vector<1x256xf32>
    %291 = arith.mulf %290, %289 : vector<1x256xf32>
    %292 = vector.extract_strided_slice %288 {offsets = [0, 0], sizes = [1, 256], strides = [1, 1]} : vector<1x384xf32> to vector<1x256xf32>
    %293 = vector.broadcast %92 : f32 to vector<1x256xf32>
    %294 = arith.mulf %293, %292 : vector<1x256xf32>
    %295 = arith.addf %291, %294 : vector<1x256xf32>
    %296 = arith.addf %276, %295 : vector<1x256xf32>
    %297 = arith.addf %296, %286 : vector<1x256xf32>
    %cst_43 = arith.constant 0.000000e+00 : f32
    %298 = vector.broadcast %cst_43 : f32 to vector<1x256xf32>
    %299 = arith.select %124, %297, %298 : vector<1x256xi1>, vector<1x256xf32>
    %c49_i32 = arith.constant 49 : i32
    %300 = tpu.dynamic_rotate %156 by %c49_i32 dim 1 : vector<1x384xf32>, i32 -> vector<1x384xf32>
    %c49_i32_44 = arith.constant 49 : i32
    %301 = tpu.dynamic_rotate %157 by %c49_i32_44 dim 1 : vector<1x384xf32>, i32 -> vector<1x384xf32>
    %302 = vector.extract_strided_slice %300 {offsets = [0, 0], sizes = [1, 256], strides = [1, 1]} : vector<1x384xf32> to vector<1x256xf32>
    %303 = vector.broadcast %2 : f32 to vector<1x256xf32>
    %304 = arith.mulf %303, %302 : vector<1x256xf32>
    %305 = vector.extract_strided_slice %301 {offsets = [0, 0], sizes = [1, 256], strides = [1, 1]} : vector<1x384xf32> to vector<1x256xf32>
    %306 = vector.broadcast %51 : f32 to vector<1x256xf32>
    %307 = arith.mulf %306, %305 : vector<1x256xf32>
    %308 = arith.addf %304, %307 : vector<1x256xf32>
    %c33_i32 = arith.constant 33 : i32
    %309 = tpu.dynamic_rotate %156 by %c33_i32 dim 1 : vector<1x384xf32>, i32 -> vector<1x384xf32>
    %c33_i32_45 = arith.constant 33 : i32
    %310 = tpu.dynamic_rotate %157 by %c33_i32_45 dim 1 : vector<1x384xf32>, i32 -> vector<1x384xf32>
    %311 = vector.extract_strided_slice %309 {offsets = [0, 0], sizes = [1, 256], strides = [1, 1]} : vector<1x384xf32> to vector<1x256xf32>
    %312 = vector.broadcast %9 : f32 to vector<1x256xf32>
    %313 = arith.mulf %312, %311 : vector<1x256xf32>
    %314 = vector.extract_strided_slice %310 {offsets = [0, 0], sizes = [1, 256], strides = [1, 1]} : vector<1x384xf32> to vector<1x256xf32>
    %315 = vector.broadcast %58 : f32 to vector<1x256xf32>
    %316 = arith.mulf %315, %314 : vector<1x256xf32>
    %317 = arith.addf %313, %316 : vector<1x256xf32>
    %c17_i32 = arith.constant 17 : i32
    %318 = tpu.dynamic_rotate %156 by %c17_i32 dim 1 : vector<1x384xf32>, i32 -> vector<1x384xf32>
    %c17_i32_46 = arith.constant 17 : i32
    %319 = tpu.dynamic_rotate %157 by %c17_i32_46 dim 1 : vector<1x384xf32>, i32 -> vector<1x384xf32>
    %320 = vector.extract_strided_slice %318 {offsets = [0, 0], sizes = [1, 256], strides = [1, 1]} : vector<1x384xf32> to vector<1x256xf32>
    %321 = vector.broadcast %16 : f32 to vector<1x256xf32>
    %322 = arith.mulf %321, %320 : vector<1x256xf32>
    %323 = vector.extract_strided_slice %319 {offsets = [0, 0], sizes = [1, 256], strides = [1, 1]} : vector<1x384xf32> to vector<1x256xf32>
    %324 = vector.broadcast %65 : f32 to vector<1x256xf32>
    %325 = arith.mulf %324, %323 : vector<1x256xf32>
    %326 = arith.addf %322, %325 : vector<1x256xf32>
    %327 = arith.addf %308, %326 : vector<1x256xf32>
    %c1_i32_47 = arith.constant 1 : i32
    %328 = tpu.dynamic_rotate %156 by %c1_i32_47 dim 1 : vector<1x384xf32>, i32 -> vector<1x384xf32>
    %c1_i32_48 = arith.constant 1 : i32
    %329 = tpu.dynamic_rotate %157 by %c1_i32_48 dim 1 : vector<1x384xf32>, i32 -> vector<1x384xf32>
    %330 = vector.extract_strided_slice %328 {offsets = [0, 0], sizes = [1, 256], strides = [1, 1]} : vector<1x384xf32> to vector<1x256xf32>
    %331 = vector.broadcast %23 : f32 to vector<1x256xf32>
    %332 = arith.mulf %331, %330 : vector<1x256xf32>
    %333 = vector.extract_strided_slice %329 {offsets = [0, 0], sizes = [1, 256], strides = [1, 1]} : vector<1x384xf32> to vector<1x256xf32>
    %334 = vector.broadcast %72 : f32 to vector<1x256xf32>
    %335 = arith.mulf %334, %333 : vector<1x256xf32>
    %336 = arith.addf %332, %335 : vector<1x256xf32>
    %337 = arith.addf %317, %336 : vector<1x256xf32>
    %c369_i32 = arith.constant 369 : i32
    %338 = tpu.dynamic_rotate %156 by %c369_i32 dim 1 : vector<1x384xf32>, i32 -> vector<1x384xf32>
    %c369_i32_49 = arith.constant 369 : i32
    %339 = tpu.dynamic_rotate %157 by %c369_i32_49 dim 1 : vector<1x384xf32>, i32 -> vector<1x384xf32>
    %340 = vector.extract_strided_slice %338 {offsets = [0, 0], sizes = [1, 256], strides = [1, 1]} : vector<1x384xf32> to vector<1x256xf32>
    %341 = vector.broadcast %30 : f32 to vector<1x256xf32>
    %342 = arith.mulf %341, %340 : vector<1x256xf32>
    %343 = vector.extract_strided_slice %339 {offsets = [0, 0], sizes = [1, 256], strides = [1, 1]} : vector<1x384xf32> to vector<1x256xf32>
    %344 = vector.broadcast %79 : f32 to vector<1x256xf32>
    %345 = arith.mulf %344, %343 : vector<1x256xf32>
    %346 = arith.addf %342, %345 : vector<1x256xf32>
    %347 = arith.addf %327, %346 : vector<1x256xf32>
    %c353_i32 = arith.constant 353 : i32
    %348 = tpu.dynamic_rotate %156 by %c353_i32 dim 1 : vector<1x384xf32>, i32 -> vector<1x384xf32>
    %c353_i32_50 = arith.constant 353 : i32
    %349 = tpu.dynamic_rotate %157 by %c353_i32_50 dim 1 : vector<1x384xf32>, i32 -> vector<1x384xf32>
    %350 = vector.extract_strided_slice %348 {offsets = [0, 0], sizes = [1, 256], strides = [1, 1]} : vector<1x384xf32> to vector<1x256xf32>
    %351 = vector.broadcast %37 : f32 to vector<1x256xf32>
    %352 = arith.mulf %351, %350 : vector<1x256xf32>
    %353 = vector.extract_strided_slice %349 {offsets = [0, 0], sizes = [1, 256], strides = [1, 1]} : vector<1x384xf32> to vector<1x256xf32>
    %354 = vector.broadcast %86 : f32 to vector<1x256xf32>
    %355 = arith.mulf %354, %353 : vector<1x256xf32>
    %356 = arith.addf %352, %355 : vector<1x256xf32>
    %357 = arith.addf %337, %356 : vector<1x256xf32>
    %c337_i32 = arith.constant 337 : i32
    %358 = tpu.dynamic_rotate %156 by %c337_i32 dim 1 : vector<1x384xf32>, i32 -> vector<1x384xf32>
    %c337_i32_51 = arith.constant 337 : i32
    %359 = tpu.dynamic_rotate %157 by %c337_i32_51 dim 1 : vector<1x384xf32>, i32 -> vector<1x384xf32>
    %360 = vector.extract_strided_slice %358 {offsets = [0, 0], sizes = [1, 256], strides = [1, 1]} : vector<1x384xf32> to vector<1x256xf32>
    %361 = vector.broadcast %44 : f32 to vector<1x256xf32>
    %362 = arith.mulf %361, %360 : vector<1x256xf32>
    %363 = vector.extract_strided_slice %359 {offsets = [0, 0], sizes = [1, 256], strides = [1, 1]} : vector<1x384xf32> to vector<1x256xf32>
    %364 = vector.broadcast %93 : f32 to vector<1x256xf32>
    %365 = arith.mulf %364, %363 : vector<1x256xf32>
    %366 = arith.addf %362, %365 : vector<1x256xf32>
    %367 = arith.addf %347, %366 : vector<1x256xf32>
    %368 = arith.addf %367, %357 : vector<1x256xf32>
    %cst_52 = arith.constant 0.000000e+00 : f32
    %369 = vector.broadcast %cst_52 : f32 to vector<1x256xf32>
    %370 = arith.select %129, %368, %369 : vector<1x256xi1>, vector<1x256xf32>
    %c48_i32 = arith.constant 48 : i32
    %371 = tpu.dynamic_rotate %156 by %c48_i32 dim 1 : vector<1x384xf32>, i32 -> vector<1x384xf32>
    %c48_i32_53 = arith.constant 48 : i32
    %372 = tpu.dynamic_rotate %157 by %c48_i32_53 dim 1 : vector<1x384xf32>, i32 -> vector<1x384xf32>
    %373 = vector.extract_strided_slice %371 {offsets = [0, 0], sizes = [1, 256], strides = [1, 1]} : vector<1x384xf32> to vector<1x256xf32>
    %374 = vector.broadcast %3 : f32 to vector<1x256xf32>
    %375 = arith.mulf %374, %373 : vector<1x256xf32>
    %376 = vector.extract_strided_slice %372 {offsets = [0, 0], sizes = [1, 256], strides = [1, 1]} : vector<1x384xf32> to vector<1x256xf32>
    %377 = vector.broadcast %52 : f32 to vector<1x256xf32>
    %378 = arith.mulf %377, %376 : vector<1x256xf32>
    %379 = arith.addf %375, %378 : vector<1x256xf32>
    %c32_i32 = arith.constant 32 : i32
    %380 = tpu.dynamic_rotate %156 by %c32_i32 dim 1 : vector<1x384xf32>, i32 -> vector<1x384xf32>
    %c32_i32_54 = arith.constant 32 : i32
    %381 = tpu.dynamic_rotate %157 by %c32_i32_54 dim 1 : vector<1x384xf32>, i32 -> vector<1x384xf32>
    %382 = vector.extract_strided_slice %380 {offsets = [0, 0], sizes = [1, 256], strides = [1, 1]} : vector<1x384xf32> to vector<1x256xf32>
    %383 = vector.broadcast %10 : f32 to vector<1x256xf32>
    %384 = arith.mulf %383, %382 : vector<1x256xf32>
    %385 = vector.extract_strided_slice %381 {offsets = [0, 0], sizes = [1, 256], strides = [1, 1]} : vector<1x384xf32> to vector<1x256xf32>
    %386 = vector.broadcast %59 : f32 to vector<1x256xf32>
    %387 = arith.mulf %386, %385 : vector<1x256xf32>
    %388 = arith.addf %384, %387 : vector<1x256xf32>
    %c16_i32_55 = arith.constant 16 : i32
    %389 = tpu.dynamic_rotate %156 by %c16_i32_55 dim 1 : vector<1x384xf32>, i32 -> vector<1x384xf32>
    %c16_i32_56 = arith.constant 16 : i32
    %390 = tpu.dynamic_rotate %157 by %c16_i32_56 dim 1 : vector<1x384xf32>, i32 -> vector<1x384xf32>
    %391 = vector.extract_strided_slice %389 {offsets = [0, 0], sizes = [1, 256], strides = [1, 1]} : vector<1x384xf32> to vector<1x256xf32>
    %392 = vector.broadcast %17 : f32 to vector<1x256xf32>
    %393 = arith.mulf %392, %391 : vector<1x256xf32>
    %394 = vector.extract_strided_slice %390 {offsets = [0, 0], sizes = [1, 256], strides = [1, 1]} : vector<1x384xf32> to vector<1x256xf32>
    %395 = vector.broadcast %66 : f32 to vector<1x256xf32>
    %396 = arith.mulf %395, %394 : vector<1x256xf32>
    %397 = arith.addf %393, %396 : vector<1x256xf32>
    %398 = arith.addf %379, %397 : vector<1x256xf32>
    %399 = vector.extract_strided_slice %156 {offsets = [0, 0], sizes = [1, 256], strides = [1, 1]} : vector<1x384xf32> to vector<1x256xf32>
    %400 = vector.broadcast %24 : f32 to vector<1x256xf32>
    %401 = arith.mulf %400, %399 : vector<1x256xf32>
    %402 = vector.extract_strided_slice %157 {offsets = [0, 0], sizes = [1, 256], strides = [1, 1]} : vector<1x384xf32> to vector<1x256xf32>
    %403 = vector.broadcast %73 : f32 to vector<1x256xf32>
    %404 = arith.mulf %403, %402 : vector<1x256xf32>
    %405 = arith.addf %401, %404 : vector<1x256xf32>
    %406 = arith.addf %388, %405 : vector<1x256xf32>
    %c368_i32 = arith.constant 368 : i32
    %407 = tpu.dynamic_rotate %156 by %c368_i32 dim 1 : vector<1x384xf32>, i32 -> vector<1x384xf32>
    %c368_i32_57 = arith.constant 368 : i32
    %408 = tpu.dynamic_rotate %157 by %c368_i32_57 dim 1 : vector<1x384xf32>, i32 -> vector<1x384xf32>
    %409 = vector.extract_strided_slice %407 {offsets = [0, 0], sizes = [1, 256], strides = [1, 1]} : vector<1x384xf32> to vector<1x256xf32>
    %410 = vector.broadcast %31 : f32 to vector<1x256xf32>
    %411 = arith.mulf %410, %409 : vector<1x256xf32>
    %412 = vector.extract_strided_slice %408 {offsets = [0, 0], sizes = [1, 256], strides = [1, 1]} : vector<1x384xf32> to vector<1x256xf32>
    %413 = vector.broadcast %80 : f32 to vector<1x256xf32>
    %414 = arith.mulf %413, %412 : vector<1x256xf32>
    %415 = arith.addf %411, %414 : vector<1x256xf32>
    %416 = arith.addf %398, %415 : vector<1x256xf32>
    %c352_i32 = arith.constant 352 : i32
    %417 = tpu.dynamic_rotate %156 by %c352_i32 dim 1 : vector<1x384xf32>, i32 -> vector<1x384xf32>
    %c352_i32_58 = arith.constant 352 : i32
    %418 = tpu.dynamic_rotate %157 by %c352_i32_58 dim 1 : vector<1x384xf32>, i32 -> vector<1x384xf32>
    %419 = vector.extract_strided_slice %417 {offsets = [0, 0], sizes = [1, 256], strides = [1, 1]} : vector<1x384xf32> to vector<1x256xf32>
    %420 = vector.broadcast %38 : f32 to vector<1x256xf32>
    %421 = arith.mulf %420, %419 : vector<1x256xf32>
    %422 = vector.extract_strided_slice %418 {offsets = [0, 0], sizes = [1, 256], strides = [1, 1]} : vector<1x384xf32> to vector<1x256xf32>
    %423 = vector.broadcast %87 : f32 to vector<1x256xf32>
    %424 = arith.mulf %423, %422 : vector<1x256xf32>
    %425 = arith.addf %421, %424 : vector<1x256xf32>
    %426 = arith.addf %406, %425 : vector<1x256xf32>
    %c336_i32 = arith.constant 336 : i32
    %427 = tpu.dynamic_rotate %156 by %c336_i32 dim 1 : vector<1x384xf32>, i32 -> vector<1x384xf32>
    %c336_i32_59 = arith.constant 336 : i32
    %428 = tpu.dynamic_rotate %157 by %c336_i32_59 dim 1 : vector<1x384xf32>, i32 -> vector<1x384xf32>
    %429 = vector.extract_strided_slice %427 {offsets = [0, 0], sizes = [1, 256], strides = [1, 1]} : vector<1x384xf32> to vector<1x256xf32>
    %430 = vector.broadcast %45 : f32 to vector<1x256xf32>
    %431 = arith.mulf %430, %429 : vector<1x256xf32>
    %432 = vector.extract_strided_slice %428 {offsets = [0, 0], sizes = [1, 256], strides = [1, 1]} : vector<1x384xf32> to vector<1x256xf32>
    %433 = vector.broadcast %94 : f32 to vector<1x256xf32>
    %434 = arith.mulf %433, %432 : vector<1x256xf32>
    %435 = arith.addf %431, %434 : vector<1x256xf32>
    %436 = arith.addf %416, %435 : vector<1x256xf32>
    %437 = arith.addf %436, %426 : vector<1x256xf32>
    %c47_i32 = arith.constant 47 : i32
    %438 = tpu.dynamic_rotate %156 by %c47_i32 dim 1 : vector<1x384xf32>, i32 -> vector<1x384xf32>
    %c47_i32_60 = arith.constant 47 : i32
    %439 = tpu.dynamic_rotate %157 by %c47_i32_60 dim 1 : vector<1x384xf32>, i32 -> vector<1x384xf32>
    %440 = vector.extract_strided_slice %438 {offsets = [0, 0], sizes = [1, 256], strides = [1, 1]} : vector<1x384xf32> to vector<1x256xf32>
    %441 = vector.broadcast %4 : f32 to vector<1x256xf32>
    %442 = arith.mulf %441, %440 : vector<1x256xf32>
    %443 = vector.extract_strided_slice %439 {offsets = [0, 0], sizes = [1, 256], strides = [1, 1]} : vector<1x384xf32> to vector<1x256xf32>
    %444 = vector.broadcast %53 : f32 to vector<1x256xf32>
    %445 = arith.mulf %444, %443 : vector<1x256xf32>
    %446 = arith.addf %442, %445 : vector<1x256xf32>
    %c31_i32 = arith.constant 31 : i32
    %447 = tpu.dynamic_rotate %156 by %c31_i32 dim 1 : vector<1x384xf32>, i32 -> vector<1x384xf32>
    %c31_i32_61 = arith.constant 31 : i32
    %448 = tpu.dynamic_rotate %157 by %c31_i32_61 dim 1 : vector<1x384xf32>, i32 -> vector<1x384xf32>
    %449 = vector.extract_strided_slice %447 {offsets = [0, 0], sizes = [1, 256], strides = [1, 1]} : vector<1x384xf32> to vector<1x256xf32>
    %450 = vector.broadcast %11 : f32 to vector<1x256xf32>
    %451 = arith.mulf %450, %449 : vector<1x256xf32>
    %452 = vector.extract_strided_slice %448 {offsets = [0, 0], sizes = [1, 256], strides = [1, 1]} : vector<1x384xf32> to vector<1x256xf32>
    %453 = vector.broadcast %60 : f32 to vector<1x256xf32>
    %454 = arith.mulf %453, %452 : vector<1x256xf32>
    %455 = arith.addf %451, %454 : vector<1x256xf32>
    %c15_i32_62 = arith.constant 15 : i32
    %456 = tpu.dynamic_rotate %156 by %c15_i32_62 dim 1 : vector<1x384xf32>, i32 -> vector<1x384xf32>
    %c15_i32_63 = arith.constant 15 : i32
    %457 = tpu.dynamic_rotate %157 by %c15_i32_63 dim 1 : vector<1x384xf32>, i32 -> vector<1x384xf32>
    %458 = vector.extract_strided_slice %456 {offsets = [0, 0], sizes = [1, 256], strides = [1, 1]} : vector<1x384xf32> to vector<1x256xf32>
    %459 = vector.broadcast %18 : f32 to vector<1x256xf32>
    %460 = arith.mulf %459, %458 : vector<1x256xf32>
    %461 = vector.extract_strided_slice %457 {offsets = [0, 0], sizes = [1, 256], strides = [1, 1]} : vector<1x384xf32> to vector<1x256xf32>
    %462 = vector.broadcast %67 : f32 to vector<1x256xf32>
    %463 = arith.mulf %462, %461 : vector<1x256xf32>
    %464 = arith.addf %460, %463 : vector<1x256xf32>
    %465 = arith.addf %446, %464 : vector<1x256xf32>
    %c383_i32 = arith.constant 383 : i32
    %466 = tpu.dynamic_rotate %156 by %c383_i32 dim 1 : vector<1x384xf32>, i32 -> vector<1x384xf32>
    %c383_i32_64 = arith.constant 383 : i32
    %467 = tpu.dynamic_rotate %157 by %c383_i32_64 dim 1 : vector<1x384xf32>, i32 -> vector<1x384xf32>
    %468 = vector.extract_strided_slice %466 {offsets = [0, 0], sizes = [1, 256], strides = [1, 1]} : vector<1x384xf32> to vector<1x256xf32>
    %469 = vector.broadcast %25 : f32 to vector<1x256xf32>
    %470 = arith.mulf %469, %468 : vector<1x256xf32>
    %471 = vector.extract_strided_slice %467 {offsets = [0, 0], sizes = [1, 256], strides = [1, 1]} : vector<1x384xf32> to vector<1x256xf32>
    %472 = vector.broadcast %74 : f32 to vector<1x256xf32>
    %473 = arith.mulf %472, %471 : vector<1x256xf32>
    %474 = arith.addf %470, %473 : vector<1x256xf32>
    %475 = arith.addf %455, %474 : vector<1x256xf32>
    %c367_i32 = arith.constant 367 : i32
    %476 = tpu.dynamic_rotate %156 by %c367_i32 dim 1 : vector<1x384xf32>, i32 -> vector<1x384xf32>
    %c367_i32_65 = arith.constant 367 : i32
    %477 = tpu.dynamic_rotate %157 by %c367_i32_65 dim 1 : vector<1x384xf32>, i32 -> vector<1x384xf32>
    %478 = vector.extract_strided_slice %476 {offsets = [0, 0], sizes = [1, 256], strides = [1, 1]} : vector<1x384xf32> to vector<1x256xf32>
    %479 = vector.broadcast %32 : f32 to vector<1x256xf32>
    %480 = arith.mulf %479, %478 : vector<1x256xf32>
    %481 = vector.extract_strided_slice %477 {offsets = [0, 0], sizes = [1, 256], strides = [1, 1]} : vector<1x384xf32> to vector<1x256xf32>
    %482 = vector.broadcast %81 : f32 to vector<1x256xf32>
    %483 = arith.mulf %482, %481 : vector<1x256xf32>
    %484 = arith.addf %480, %483 : vector<1x256xf32>
    %485 = arith.addf %465, %484 : vector<1x256xf32>
    %c351_i32 = arith.constant 351 : i32
    %486 = tpu.dynamic_rotate %156 by %c351_i32 dim 1 : vector<1x384xf32>, i32 -> vector<1x384xf32>
    %c351_i32_66 = arith.constant 351 : i32
    %487 = tpu.dynamic_rotate %157 by %c351_i32_66 dim 1 : vector<1x384xf32>, i32 -> vector<1x384xf32>
    %488 = vector.extract_strided_slice %486 {offsets = [0, 0], sizes = [1, 256], strides = [1, 1]} : vector<1x384xf32> to vector<1x256xf32>
    %489 = vector.broadcast %39 : f32 to vector<1x256xf32>
    %490 = arith.mulf %489, %488 : vector<1x256xf32>
    %491 = vector.extract_strided_slice %487 {offsets = [0, 0], sizes = [1, 256], strides = [1, 1]} : vector<1x384xf32> to vector<1x256xf32>
    %492 = vector.broadcast %88 : f32 to vector<1x256xf32>
    %493 = arith.mulf %492, %491 : vector<1x256xf32>
    %494 = arith.addf %490, %493 : vector<1x256xf32>
    %495 = arith.addf %475, %494 : vector<1x256xf32>
    %c335_i32 = arith.constant 335 : i32
    %496 = tpu.dynamic_rotate %156 by %c335_i32 dim 1 : vector<1x384xf32>, i32 -> vector<1x384xf32>
    %c335_i32_67 = arith.constant 335 : i32
    %497 = tpu.dynamic_rotate %157 by %c335_i32_67 dim 1 : vector<1x384xf32>, i32 -> vector<1x384xf32>
    %498 = vector.extract_strided_slice %496 {offsets = [0, 0], sizes = [1, 256], strides = [1, 1]} : vector<1x384xf32> to vector<1x256xf32>
    %499 = vector.broadcast %46 : f32 to vector<1x256xf32>
    %500 = arith.mulf %499, %498 : vector<1x256xf32>
    %501 = vector.extract_strided_slice %497 {offsets = [0, 0], sizes = [1, 256], strides = [1, 1]} : vector<1x384xf32> to vector<1x256xf32>
    %502 = vector.broadcast %95 : f32 to vector<1x256xf32>
    %503 = arith.mulf %502, %501 : vector<1x256xf32>
    %504 = arith.addf %500, %503 : vector<1x256xf32>
    %505 = arith.addf %485, %504 : vector<1x256xf32>
    %506 = arith.addf %505, %495 : vector<1x256xf32>
    %cst_68 = arith.constant 0.000000e+00 : f32
    %507 = vector.broadcast %cst_68 : f32 to vector<1x256xf32>
    %508 = arith.select %134, %506, %507 : vector<1x256xi1>, vector<1x256xf32>
    %c46_i32 = arith.constant 46 : i32
    %509 = tpu.dynamic_rotate %156 by %c46_i32 dim 1 : vector<1x384xf32>, i32 -> vector<1x384xf32>
    %c46_i32_69 = arith.constant 46 : i32
    %510 = tpu.dynamic_rotate %157 by %c46_i32_69 dim 1 : vector<1x384xf32>, i32 -> vector<1x384xf32>
    %511 = vector.extract_strided_slice %509 {offsets = [0, 0], sizes = [1, 256], strides = [1, 1]} : vector<1x384xf32> to vector<1x256xf32>
    %512 = vector.broadcast %5 : f32 to vector<1x256xf32>
    %513 = arith.mulf %512, %511 : vector<1x256xf32>
    %514 = vector.extract_strided_slice %510 {offsets = [0, 0], sizes = [1, 256], strides = [1, 1]} : vector<1x384xf32> to vector<1x256xf32>
    %515 = vector.broadcast %54 : f32 to vector<1x256xf32>
    %516 = arith.mulf %515, %514 : vector<1x256xf32>
    %517 = arith.addf %513, %516 : vector<1x256xf32>
    %c30_i32 = arith.constant 30 : i32
    %518 = tpu.dynamic_rotate %156 by %c30_i32 dim 1 : vector<1x384xf32>, i32 -> vector<1x384xf32>
    %c30_i32_70 = arith.constant 30 : i32
    %519 = tpu.dynamic_rotate %157 by %c30_i32_70 dim 1 : vector<1x384xf32>, i32 -> vector<1x384xf32>
    %520 = vector.extract_strided_slice %518 {offsets = [0, 0], sizes = [1, 256], strides = [1, 1]} : vector<1x384xf32> to vector<1x256xf32>
    %521 = vector.broadcast %12 : f32 to vector<1x256xf32>
    %522 = arith.mulf %521, %520 : vector<1x256xf32>
    %523 = vector.extract_strided_slice %519 {offsets = [0, 0], sizes = [1, 256], strides = [1, 1]} : vector<1x384xf32> to vector<1x256xf32>
    %524 = vector.broadcast %61 : f32 to vector<1x256xf32>
    %525 = arith.mulf %524, %523 : vector<1x256xf32>
    %526 = arith.addf %522, %525 : vector<1x256xf32>
    %c14_i32_71 = arith.constant 14 : i32
    %527 = tpu.dynamic_rotate %156 by %c14_i32_71 dim 1 : vector<1x384xf32>, i32 -> vector<1x384xf32>
    %c14_i32_72 = arith.constant 14 : i32
    %528 = tpu.dynamic_rotate %157 by %c14_i32_72 dim 1 : vector<1x384xf32>, i32 -> vector<1x384xf32>
    %529 = vector.extract_strided_slice %527 {offsets = [0, 0], sizes = [1, 256], strides = [1, 1]} : vector<1x384xf32> to vector<1x256xf32>
    %530 = vector.broadcast %19 : f32 to vector<1x256xf32>
    %531 = arith.mulf %530, %529 : vector<1x256xf32>
    %532 = vector.extract_strided_slice %528 {offsets = [0, 0], sizes = [1, 256], strides = [1, 1]} : vector<1x384xf32> to vector<1x256xf32>
    %533 = vector.broadcast %68 : f32 to vector<1x256xf32>
    %534 = arith.mulf %533, %532 : vector<1x256xf32>
    %535 = arith.addf %531, %534 : vector<1x256xf32>
    %536 = arith.addf %517, %535 : vector<1x256xf32>
    %c382_i32 = arith.constant 382 : i32
    %537 = tpu.dynamic_rotate %156 by %c382_i32 dim 1 : vector<1x384xf32>, i32 -> vector<1x384xf32>
    %c382_i32_73 = arith.constant 382 : i32
    %538 = tpu.dynamic_rotate %157 by %c382_i32_73 dim 1 : vector<1x384xf32>, i32 -> vector<1x384xf32>
    %539 = vector.extract_strided_slice %537 {offsets = [0, 0], sizes = [1, 256], strides = [1, 1]} : vector<1x384xf32> to vector<1x256xf32>
    %540 = vector.broadcast %26 : f32 to vector<1x256xf32>
    %541 = arith.mulf %540, %539 : vector<1x256xf32>
    %542 = vector.extract_strided_slice %538 {offsets = [0, 0], sizes = [1, 256], strides = [1, 1]} : vector<1x384xf32> to vector<1x256xf32>
    %543 = vector.broadcast %75 : f32 to vector<1x256xf32>
    %544 = arith.mulf %543, %542 : vector<1x256xf32>
    %545 = arith.addf %541, %544 : vector<1x256xf32>
    %546 = arith.addf %526, %545 : vector<1x256xf32>
    %c366_i32 = arith.constant 366 : i32
    %547 = tpu.dynamic_rotate %156 by %c366_i32 dim 1 : vector<1x384xf32>, i32 -> vector<1x384xf32>
    %c366_i32_74 = arith.constant 366 : i32
    %548 = tpu.dynamic_rotate %157 by %c366_i32_74 dim 1 : vector<1x384xf32>, i32 -> vector<1x384xf32>
    %549 = vector.extract_strided_slice %547 {offsets = [0, 0], sizes = [1, 256], strides = [1, 1]} : vector<1x384xf32> to vector<1x256xf32>
    %550 = vector.broadcast %33 : f32 to vector<1x256xf32>
    %551 = arith.mulf %550, %549 : vector<1x256xf32>
    %552 = vector.extract_strided_slice %548 {offsets = [0, 0], sizes = [1, 256], strides = [1, 1]} : vector<1x384xf32> to vector<1x256xf32>
    %553 = vector.broadcast %82 : f32 to vector<1x256xf32>
    %554 = arith.mulf %553, %552 : vector<1x256xf32>
    %555 = arith.addf %551, %554 : vector<1x256xf32>
    %556 = arith.addf %536, %555 : vector<1x256xf32>
    %c350_i32 = arith.constant 350 : i32
    %557 = tpu.dynamic_rotate %156 by %c350_i32 dim 1 : vector<1x384xf32>, i32 -> vector<1x384xf32>
    %c350_i32_75 = arith.constant 350 : i32
    %558 = tpu.dynamic_rotate %157 by %c350_i32_75 dim 1 : vector<1x384xf32>, i32 -> vector<1x384xf32>
    %559 = vector.extract_strided_slice %557 {offsets = [0, 0], sizes = [1, 256], strides = [1, 1]} : vector<1x384xf32> to vector<1x256xf32>
    %560 = vector.broadcast %40 : f32 to vector<1x256xf32>
    %561 = arith.mulf %560, %559 : vector<1x256xf32>
    %562 = vector.extract_strided_slice %558 {offsets = [0, 0], sizes = [1, 256], strides = [1, 1]} : vector<1x384xf32> to vector<1x256xf32>
    %563 = vector.broadcast %89 : f32 to vector<1x256xf32>
    %564 = arith.mulf %563, %562 : vector<1x256xf32>
    %565 = arith.addf %561, %564 : vector<1x256xf32>
    %566 = arith.addf %546, %565 : vector<1x256xf32>
    %c334_i32 = arith.constant 334 : i32
    %567 = tpu.dynamic_rotate %156 by %c334_i32 dim 1 : vector<1x384xf32>, i32 -> vector<1x384xf32>
    %c334_i32_76 = arith.constant 334 : i32
    %568 = tpu.dynamic_rotate %157 by %c334_i32_76 dim 1 : vector<1x384xf32>, i32 -> vector<1x384xf32>
    %569 = vector.extract_strided_slice %567 {offsets = [0, 0], sizes = [1, 256], strides = [1, 1]} : vector<1x384xf32> to vector<1x256xf32>
    %570 = vector.broadcast %47 : f32 to vector<1x256xf32>
    %571 = arith.mulf %570, %569 : vector<1x256xf32>
    %572 = vector.extract_strided_slice %568 {offsets = [0, 0], sizes = [1, 256], strides = [1, 1]} : vector<1x384xf32> to vector<1x256xf32>
    %573 = vector.broadcast %96 : f32 to vector<1x256xf32>
    %574 = arith.mulf %573, %572 : vector<1x256xf32>
    %575 = arith.addf %571, %574 : vector<1x256xf32>
    %576 = arith.addf %556, %575 : vector<1x256xf32>
    %577 = arith.addf %576, %566 : vector<1x256xf32>
    %cst_77 = arith.constant 0.000000e+00 : f32
    %578 = vector.broadcast %cst_77 : f32 to vector<1x256xf32>
    %579 = arith.select %139, %577, %578 : vector<1x256xi1>, vector<1x256xf32>
    %c45_i32 = arith.constant 45 : i32
    %580 = tpu.dynamic_rotate %156 by %c45_i32 dim 1 : vector<1x384xf32>, i32 -> vector<1x384xf32>
    %c45_i32_78 = arith.constant 45 : i32
    %581 = tpu.dynamic_rotate %157 by %c45_i32_78 dim 1 : vector<1x384xf32>, i32 -> vector<1x384xf32>
    %582 = vector.extract_strided_slice %580 {offsets = [0, 0], sizes = [1, 256], strides = [1, 1]} : vector<1x384xf32> to vector<1x256xf32>
    %583 = vector.broadcast %6 : f32 to vector<1x256xf32>
    %584 = arith.mulf %583, %582 : vector<1x256xf32>
    %585 = vector.extract_strided_slice %581 {offsets = [0, 0], sizes = [1, 256], strides = [1, 1]} : vector<1x384xf32> to vector<1x256xf32>
    %586 = vector.broadcast %55 : f32 to vector<1x256xf32>
    %587 = arith.mulf %586, %585 : vector<1x256xf32>
    %588 = arith.addf %584, %587 : vector<1x256xf32>
    %c29_i32 = arith.constant 29 : i32
    %589 = tpu.dynamic_rotate %156 by %c29_i32 dim 1 : vector<1x384xf32>, i32 -> vector<1x384xf32>
    %c29_i32_79 = arith.constant 29 : i32
    %590 = tpu.dynamic_rotate %157 by %c29_i32_79 dim 1 : vector<1x384xf32>, i32 -> vector<1x384xf32>
    %591 = vector.extract_strided_slice %589 {offsets = [0, 0], sizes = [1, 256], strides = [1, 1]} : vector<1x384xf32> to vector<1x256xf32>
    %592 = vector.broadcast %13 : f32 to vector<1x256xf32>
    %593 = arith.mulf %592, %591 : vector<1x256xf32>
    %594 = vector.extract_strided_slice %590 {offsets = [0, 0], sizes = [1, 256], strides = [1, 1]} : vector<1x384xf32> to vector<1x256xf32>
    %595 = vector.broadcast %62 : f32 to vector<1x256xf32>
    %596 = arith.mulf %595, %594 : vector<1x256xf32>
    %597 = arith.addf %593, %596 : vector<1x256xf32>
    %c13_i32_80 = arith.constant 13 : i32
    %598 = tpu.dynamic_rotate %156 by %c13_i32_80 dim 1 : vector<1x384xf32>, i32 -> vector<1x384xf32>
    %c13_i32_81 = arith.constant 13 : i32
    %599 = tpu.dynamic_rotate %157 by %c13_i32_81 dim 1 : vector<1x384xf32>, i32 -> vector<1x384xf32>
    %600 = vector.extract_strided_slice %598 {offsets = [0, 0], sizes = [1, 256], strides = [1, 1]} : vector<1x384xf32> to vector<1x256xf32>
    %601 = vector.broadcast %20 : f32 to vector<1x256xf32>
    %602 = arith.mulf %601, %600 : vector<1x256xf32>
    %603 = vector.extract_strided_slice %599 {offsets = [0, 0], sizes = [1, 256], strides = [1, 1]} : vector<1x384xf32> to vector<1x256xf32>
    %604 = vector.broadcast %69 : f32 to vector<1x256xf32>
    %605 = arith.mulf %604, %603 : vector<1x256xf32>
    %606 = arith.addf %602, %605 : vector<1x256xf32>
    %607 = arith.addf %588, %606 : vector<1x256xf32>
    %c381_i32 = arith.constant 381 : i32
    %608 = tpu.dynamic_rotate %156 by %c381_i32 dim 1 : vector<1x384xf32>, i32 -> vector<1x384xf32>
    %c381_i32_82 = arith.constant 381 : i32
    %609 = tpu.dynamic_rotate %157 by %c381_i32_82 dim 1 : vector<1x384xf32>, i32 -> vector<1x384xf32>
    %610 = vector.extract_strided_slice %608 {offsets = [0, 0], sizes = [1, 256], strides = [1, 1]} : vector<1x384xf32> to vector<1x256xf32>
    %611 = vector.broadcast %27 : f32 to vector<1x256xf32>
    %612 = arith.mulf %611, %610 : vector<1x256xf32>
    %613 = vector.extract_strided_slice %609 {offsets = [0, 0], sizes = [1, 256], strides = [1, 1]} : vector<1x384xf32> to vector<1x256xf32>
    %614 = vector.broadcast %76 : f32 to vector<1x256xf32>
    %615 = arith.mulf %614, %613 : vector<1x256xf32>
    %616 = arith.addf %612, %615 : vector<1x256xf32>
    %617 = arith.addf %597, %616 : vector<1x256xf32>
    %c365_i32 = arith.constant 365 : i32
    %618 = tpu.dynamic_rotate %156 by %c365_i32 dim 1 : vector<1x384xf32>, i32 -> vector<1x384xf32>
    %c365_i32_83 = arith.constant 365 : i32
    %619 = tpu.dynamic_rotate %157 by %c365_i32_83 dim 1 : vector<1x384xf32>, i32 -> vector<1x384xf32>
    %620 = vector.extract_strided_slice %618 {offsets = [0, 0], sizes = [1, 256], strides = [1, 1]} : vector<1x384xf32> to vector<1x256xf32>
    %621 = vector.broadcast %34 : f32 to vector<1x256xf32>
    %622 = arith.mulf %621, %620 : vector<1x256xf32>
    %623 = vector.extract_strided_slice %619 {offsets = [0, 0], sizes = [1, 256], strides = [1, 1]} : vector<1x384xf32> to vector<1x256xf32>
    %624 = vector.broadcast %83 : f32 to vector<1x256xf32>
    %625 = arith.mulf %624, %623 : vector<1x256xf32>
    %626 = arith.addf %622, %625 : vector<1x256xf32>
    %627 = arith.addf %607, %626 : vector<1x256xf32>
    %c349_i32 = arith.constant 349 : i32
    %628 = tpu.dynamic_rotate %156 by %c349_i32 dim 1 : vector<1x384xf32>, i32 -> vector<1x384xf32>
    %c349_i32_84 = arith.constant 349 : i32
    %629 = tpu.dynamic_rotate %157 by %c349_i32_84 dim 1 : vector<1x384xf32>, i32 -> vector<1x384xf32>
    %630 = vector.extract_strided_slice %628 {offsets = [0, 0], sizes = [1, 256], strides = [1, 1]} : vector<1x384xf32> to vector<1x256xf32>
    %631 = vector.broadcast %41 : f32 to vector<1x256xf32>
    %632 = arith.mulf %631, %630 : vector<1x256xf32>
    %633 = vector.extract_strided_slice %629 {offsets = [0, 0], sizes = [1, 256], strides = [1, 1]} : vector<1x384xf32> to vector<1x256xf32>
    %634 = vector.broadcast %90 : f32 to vector<1x256xf32>
    %635 = arith.mulf %634, %633 : vector<1x256xf32>
    %636 = arith.addf %632, %635 : vector<1x256xf32>
    %637 = arith.addf %617, %636 : vector<1x256xf32>
    %c333_i32 = arith.constant 333 : i32
    %638 = tpu.dynamic_rotate %156 by %c333_i32 dim 1 : vector<1x384xf32>, i32 -> vector<1x384xf32>
    %c333_i32_85 = arith.constant 333 : i32
    %639 = tpu.dynamic_rotate %157 by %c333_i32_85 dim 1 : vector<1x384xf32>, i32 -> vector<1x384xf32>
    %640 = vector.extract_strided_slice %638 {offsets = [0, 0], sizes = [1, 256], strides = [1, 1]} : vector<1x384xf32> to vector<1x256xf32>
    %641 = vector.broadcast %48 : f32 to vector<1x256xf32>
    %642 = arith.mulf %641, %640 : vector<1x256xf32>
    %643 = vector.extract_strided_slice %639 {offsets = [0, 0], sizes = [1, 256], strides = [1, 1]} : vector<1x384xf32> to vector<1x256xf32>
    %644 = vector.broadcast %97 : f32 to vector<1x256xf32>
    %645 = arith.mulf %644, %643 : vector<1x256xf32>
    %646 = arith.addf %642, %645 : vector<1x256xf32>
    %647 = arith.addf %627, %646 : vector<1x256xf32>
    %648 = arith.addf %647, %637 : vector<1x256xf32>
    %cst_86 = arith.constant 0.000000e+00 : f32
    %649 = vector.broadcast %cst_86 : f32 to vector<1x256xf32>
    %650 = arith.select %144, %648, %649 : vector<1x256xi1>, vector<1x256xf32>
    %651 = arith.addf %228, %299 : vector<1x256xf32>
    %652 = arith.addf %370, %437 : vector<1x256xf32>
    %653 = arith.addf %651, %652 : vector<1x256xf32>
    %654 = arith.addf %508, %579 : vector<1x256xf32>
    %655 = arith.addf %654, %650 : vector<1x256xf32>
    %656 = arith.addf %653, %655 : vector<1x256xf32>
    %657 = arith.negf %656 : vector<1x256xf32>
    %658 = math.exp %657 : vector<1x256xf32>
    %cst_87 = arith.constant 1.000000e+00 : f32
    %659 = vector.broadcast %cst_87 : f32 to vector<1x256xf32>
    %660 = arith.addf %659, %658 : vector<1x256xf32>
    %661 = arith.divf %659, %660 : vector<1x256xf32>
    %c0_88 = arith.constant 0 : index
    %c0_89 = arith.constant 0 : index
    %c0_90 = arith.constant 0 : index
    %662 = vector.load %arg3[%c0_88, %c0_89, %c0_90] : memref<1x1x256xf32, #tpu.memory_space<vmem>>, vector<1x1x256xf32>
    %663 = vector.shape_cast %662 : vector<1x1x256xf32> to vector<1x256xf32>
    %664 = vector.shape_cast %661 : vector<1x256xf32> to vector<1x1x256xf32>
    tpu.vector_store %arg3[%c0_88, %c0_89, %c0_90], %664 {strides = array<i32>} : memref<1x1x256xf32, #tpu.memory_space<vmem>>, vector<1x1x256xf32>,
    return
  }
  func.func @transform_0(%arg0: i32) -> i32 {
    %c0_i32 = arith.constant 0 : i32
    %c0_i32_0 = arith.constant 0 : i32
    return %c0_i32 : i32
  }
  func.func @transform_1(%arg0: i32) -> (i32, i32, i32) {
    %c0_i32 = arith.constant 0 : i32
    %c0_i32_0 = arith.constant 0 : i32
    %c0_i32_1 = arith.constant 0 : i32
    return %arg0, %c0_i32, %c0_i32_0 : i32, i32, i32
  }
  func.func @transform_2(%arg0: i32) -> (i32, i32, i32) {
    %c0_i32 = arith.constant 0 : i32
    %c0_i32_0 = arith.constant 0 : i32
    %c0_i32_1 = arith.constant 0 : i32
    return %arg0, %c0_i32, %c0_i32_0 : i32, i32, i32
  }
}

</mosaic_0001>

<llo_original>
// kernel: tpu_custom_call.1
$region0: #{tpu_custom_call.1}
  #allocation0 [shape = 'u32[]', space=smem, size = 0x4, offset = 0x4, fixed_abs, tag = 'smem constant byte address 0x4 - core index']
  #allocation1 [shape = 'u32[72,128]{1,0:T(1,128)}', space=vmem, size = 0x9000, scoped, tag = 'internal scratch']
  #allocation2 [shape = 'f32[1,384]{1,0:T(1,128)}', space=vmem, size = 0x600, scoped, tag = 'scratch operand']
  #allocation3 [shape = 'f32[1,384]{1,0:T(1,128)}', space=vmem, size = 0x600, scoped, tag = 'scratch operand']
  %s0 = inlined_call_operand.hbm [shape: f32[98], index: 0, kind: input, shape index: {}]
  %s1 = inlined_call_operand.hbm [shape: f32[2,4,256], index: 1, kind: input, shape index: {}]
  %s2 = inlined_call_operand.hbm [shape: f32[2,1,256], index: 2, kind: output, shape index: {}]
  %s3 = sld [smem:[#allocation0]]
  $region49: #{tpu_custom_call.1} parent=0
    _
  %s5 = ssub.s32 1, %s3
  %s6 = scalar_select 0, %s5, %s3
  $region1: #{tpu_custom_call.1} parent=0
    #allocation4 [shape = 'u8[512]{0}', space=smem, size = 0x200, scoped, tag = 'input window, operand 0, single buffered']
    #allocation5 [shape = 's32[2]{0}', space=sflag, size = 0x8, scoped, tag = 'scoped memory for tpu_custom_call.1']
    #allocation6 [shape = 's32[2]{0}', space=sflag, size = 0x8, scoped, tag = 'scoped memory for tpu_custom_call.1']
    #allocation7 [shape = 's32[2]{0}', space=sflag, size = 0x8, scoped, tag = 'scoped memory for tpu_custom_call.1']
    #allocation8 [shape = 'u8[8192]{0}', space=vmem, size = 0x2000, scoped, tag = 'input window, operand 1']
    #allocation9 [shape = 'u8[2048]{0}', space=vmem, size = 0x800, scoped, tag = 'output window, operand 0']
    %7 = vsyncpa [#allocation7], 0
    %8 = vsyncpa [#allocation5], 0
    %s9 = scalar_lea.sflag [#allocation5], 1
    %10 = vsyncpa %s9, 0
    %11 = vsyncpa [#allocation6], 0
    %s12 = scalar_lea.sflag [#allocation6], 1
    %13 = vsyncpa %s12, 0
    loop: start=0, step=1, limit=4
    $region2: #{tpu_custom_call.1} parent=1 // loop_pre_header
      _
    $region3: #{tpu_custom_call.1} parent=1 // loop_header
      %s15 = sphi 0, %s19
      %p16 = scmp.ge.s32.totalorder %s15, 4
      %s23 = sphi 0, %s23
      %s25 = sphi 0, %s23
      %s26 = sphi 0, %s25
      %s40 = sphi 0, %s26
      %s46 = sphi 0, %s48
      %s49 = sphi 0, %s46
      %s50 = sphi 0, %s49
      %s66 = sphi 0, %s50
      %s72 = sphi 0, %s74
      %s75 = sphi 0, %s72
      %s76 = sphi 0, %s75
      %s92 = sphi 0, %s76
    $region4: #{tpu_custom_call.1} parent=1 // loop_header_branch
      %18 = sbr.rel (%p16) target = $region8
    $region5: #{tpu_custom_call.1} parent=1 // loop_body
      %s20 = ssub.s32 %s15, 1
      %s21 = ssub.s32 %s15, 2
      %s22 = sadd.s32 %s15, 1
      %s24 = sadd.s32 %s23, 1
      %p27 = scmp.eq.s32.totalorder %s15, 1
      %p28 = scmp.ne.s32.totalorder %s23, %s25
      %p29 = scmp.eq.s32.totalorder %s15, 0
      %p30 = por %p28, %p29
      %p31 = scmp.ne.s32.totalorder %s23, %s25
      %p32 = scmp.eq.s32.totalorder %s20, 1
      %p33 = por %p31, %p32
      %p34 = scmp.ne.s32.totalorder %s25, %s26
      %p35 = scmp.eq.s32.totalorder %s20, 0
      %p36 = por %p34, %p35
      %p37 = scmp.ne.s32.totalorder %s25, %s26
      %p38 = scmp.eq.s32.totalorder %s21, 1
      %p39 = por %p37, %p38
      %p41 = scmp.ne.s32.totalorder %s26, %s40
      %p42 = scmp.eq.s32.totalorder %s21, 0
      %p43 = por %p41, %p42
      %s44 = ssub.s32 %s15, %s22
      %p45 = scmp.eq.s32.totalorder %s44, 0
      %s47 = sadd.s32 %s46, 1
      %s48 = scalar_select %p45, %s46, %s47
      %p51 = pneg %p45
      %p52 = scmp.eq.s32.totalorder %s15, 1
      %p53 = por %p51, %p52
      %p54 = scmp.ne.s32.totalorder %s46, %s49
      %p55 = scmp.eq.s32.totalorder %s15, 0
      %p56 = por %p54, %p55
      %p57 = scmp.ne.s32.totalorder %s46, %s49
      %p58 = scmp.eq.s32.totalorder %s20, 1
      %p59 = por %p57, %p58
      %p60 = scmp.ne.s32.totalorder %s49, %s50
      %p61 = scmp.eq.s32.totalorder %s20, 0
      %p62 = por %p60, %p61
      %p63 = scmp.ne.s32.totalorder %s49, %s50
      %p64 = scmp.eq.s32.totalorder %s21, 1
      %p65 = por %p63, %p64
      %p67 = scmp.ne.s32.totalorder %s50, %s66
      %p68 = scmp.eq.s32.totalorder %s21, 0
      %p69 = por %p67, %p68
      %s70 = ssub.s32 %s15, %s22
      %p71 = scmp.eq.s32.totalorder %s70, 0
      %s73 = sadd.s32 %s72, 1
      %s74 = scalar_select %p71, %s72, %s73
      %p77 = pneg %p71
      %p78 = scmp.eq.s32.totalorder %s15, 1
      %p79 = por %p77, %p78
      %p80 = scmp.ne.s32.totalorder %s72, %s75
      %p81 = scmp.eq.s32.totalorder %s15, 0
      %p82 = por %p80, %p81
      %p83 = scmp.ne.s32.totalorder %s72, %s75
      %p84 = scmp.eq.s32.totalorder %s20, 1
      %p85 = por %p83, %p84
      %p86 = scmp.ne.s32.totalorder %s75, %s76
      %p87 = scmp.eq.s32.totalorder %s20, 0
      %p88 = por %p86, %p87
      %p89 = scmp.ne.s32.totalorder %s75, %s76
      %p90 = scmp.eq.s32.totalorder %s21, 1
      %p91 = por %p89, %p90
      %p93 = scmp.ne.s32.totalorder %s76, %s92
      %p94 = scmp.eq.s32.totalorder %s21, 0
      %p95 = por %p93, %p94
      %p96 = scmp.le.s32.totalorder 1, %s15
      %p97 = scmp.lt.s32.totalorder %s15, 3
      %p98 = pnand %p96, %p97
      %p99 = pneg %p98
      // Predicated region
      $region9: #{tpu_custom_call.1} parent=5 // pred_check
        _
      $region10: #{tpu_custom_call.1} parent=5 // pred_check_branch
        %101 = sbr.rel (%p98) target = $region12
      $region11: #{tpu_custom_call.1} parent=5 // pred_region
        %s102 = ssub.s32 %s15, 1
        // Predicated region
        $region13: #{tpu_custom_call.1} parent=11 // pred_check
          %p103 = pneg %p36
        $region14: #{tpu_custom_call.1} parent=11 // pred_check_branch
          %105 = sbr.rel (%p103) target = $region16
        $region15: #{tpu_custom_call.1} parent=11 // pred_region
          %107 = vsyncadd [#allocation7], 0
          %s109 = sshll.u32 %s0, 4
          %s110 = int_to_ptr.hbm [resolvable:$true] %s109
          %112 = dma.hbm_to_smem %s110, 16, [#allocation4], [#allocation7]
        $region16: #{tpu_custom_call.1} parent=11 // pred_fallthru
          _
      $region12: #{tpu_custom_call.1} parent=5 // pred_fallthru
        _
      %p113 = scmp.lt.s32.totalorder %s15, 2
      // Predicated region
      $region17: #{tpu_custom_call.1} parent=5 // pred_check
        %p114 = pneg %p113
      $region18: #{tpu_custom_call.1} parent=5 // pred_check_branch
        %116 = sbr.rel (%p114) target = $region20
      $region19: #{tpu_custom_call.1} parent=5 // pred_region
        // Predicated region
        $region21: #{tpu_custom_call.1} parent=19 // pred_check
          %p117 = pneg %p56
        $region22: #{tpu_custom_call.1} parent=19 // pred_check_branch
          %119 = sbr.rel (%p117) target = $region24
        $region23: #{tpu_custom_call.1} parent=19 // pred_region
          %s120 = sand.u32 %s46, 1
          %s121 = scalar_lea.sflag [#allocation5], %s120
          %s122 = sand.u32 %s46, 1
          %s123 = smul.addr %s122, 8
          %s124 = scalar_lea.vmem [#allocation8], %s123
          %126 = vsyncadd %s121, 0
          %s127 = smul.addr %s15, 2
          %s128 = smul.addr %s127, 4
          %s129 = scalar_lea.hbm %s1, %s128
          %s131 = sshll.u32 %s129, 4
          %s132 = int_to_ptr.hbm [resolvable:$true] %s131
          %s133 = sshll.u32 %s124, 4
          %s134 = int_to_ptr.vmem [resolvable:$true] %s133
          %136 = dma.hbm_to_vmem [thread:$0]  %s132, 128, %s134, %s121
        $region24: #{tpu_custom_call.1} parent=19 // pred_fallthru
          _
      $region20: #{tpu_custom_call.1} parent=5 // pred_fallthru
        _
      %p137 = scmp.le.s32.totalorder 1, %s15
      %p138 = scmp.lt.s32.totalorder %s15, 3
      %p139 = pnand %p137, %p138
      %p140 = pneg %p139
      // Predicated region
      $region25: #{tpu_custom_call.1} parent=5 // pred_check
        _
      $region26: #{tpu_custom_call.1} parent=5 // pred_check_branch
        %142 = sbr.rel (%p139) target = $region28
      $region27: #{tpu_custom_call.1} parent=5 // pred_region
        %s143 = ssub.s32 %s15, 1
        // Predicated region
        $region29: #{tpu_custom_call.1} parent=27 // pred_check
          %p144 = pneg %p36
        $region30: #{tpu_custom_call.1} parent=27 // pred_check_branch
          %146 = sbr.rel (%p144) target = $region32
        $region31: #{tpu_custom_call.1} parent=27 // pred_region
          %148 = dma.done [#allocation7], 16
        $region32: #{tpu_custom_call.1} parent=27 // pred_fallthru
          _
        %s149 = sand.u32 %s49, 1
        %s150 = scalar_lea.sflag [#allocation5], %s149
        %s151 = sand.u32 %s49, 1
        %s152 = smul.addr %s151, 8
        %s153 = scalar_lea.vmem [#allocation8], %s152
        // Predicated region
        $region33: #{tpu_custom_call.1} parent=27 // pred_check
          %p154 = pneg %p62
        $region34: #{tpu_custom_call.1} parent=27 // pred_check_branch
          %156 = sbr.rel (%p154) target = $region36
        $region35: #{tpu_custom_call.1} parent=27 // pred_region
          %158 = dma.done %s150, 128
        $region36: #{tpu_custom_call.1} parent=27 // pred_fallthru
          _
        %159 = sfence
        %p160 = pneg %p36
        %p161 = pneg %p33
        %s162 = sand.u32 %s49, 1
        %s163 = scalar_lea.sflag [#allocation5], %s162
        %s164 = sand.u32 %s49, 1
        %s165 = smul.addr %s164, 8
        %s166 = scalar_lea.vmem [#allocation8], %s165
        %p167 = pneg %p62
        %p168 = pneg %p59
        %p169 = pneg %p88
        %p170 = pneg %p85
        %s171 = sand.u32 %s75, 1
        %s172 = scalar_lea.sflag [#allocation6], %s171
        %s173 = sand.u32 %s75, 1
        %s174 = smul.addr %s173, 2
        %s175 = scalar_lea.vmem [#allocation9], %s174
        %s176 = sld [smem:[#allocation4]]
        %s177 = sld [smem:[#allocation4 + $0x1]]
        %s178 = sld [smem:[#allocation4 + $0x2]]
        %s179 = sld [smem:[#allocation4 + $0x3]]
        %s180 = sld [smem:[#allocation4 + $0x4]]
        %s181 = sld [smem:[#allocation4 + $0x5]]
        %s182 = sld [smem:[#allocation4 + $0x6]]
        %s183 = sld [smem:[#allocation4 + $0x7]]
        %s184 = sld [smem:[#allocation4 + $0x8]]
        %s185 = sld [smem:[#allocation4 + $0x9]]
        %s186 = sld [smem:[#allocation4 + $0xa]]
        %s187 = sld [smem:[#allocation4 + $0xb]]
        %s188 = sld [smem:[#allocation4 + $0xc]]
        %s189 = sld [smem:[#allocation4 + $0xd]]
        %s190 = sld [smem:[#allocation4 + $0xe]]
        %s191 = sld [smem:[#allocation4 + $0xf]]
        %s192 = sld [smem:[#allocation4 + $0x10]]
        %s193 = sld [smem:[#allocation4 + $0x11]]
        %s194 = sld [smem:[#allocation4 + $0x12]]
        %s195 = sld [smem:[#allocation4 + $0x13]]
        %s196 = sld [smem:[#allocation4 + $0x14]]
        %s197 = sld [smem:[#allocation4 + $0x15]]
        %s198 = sld [smem:[#allocation4 + $0x16]]
        %s199 = sld [smem:[#allocation4 + $0x17]]
        %s200 = sld [smem:[#allocation4 + $0x18]]
        %s201 = sld [smem:[#allocation4 + $0x19]]
        %s202 = sld [smem:[#allocation4 + $0x1a]]
        %s203 = sld [smem:[#allocation4 + $0x1b]]
        %s204 = sld [smem:[#allocation4 + $0x1c]]
        %s205 = sld [smem:[#allocation4 + $0x1d]]
        %s206 = sld [smem:[#allocation4 + $0x1e]]
        %s207 = sld [smem:[#allocation4 + $0x1f]]
        %s208 = sld [smem:[#allocation4 + $0x20]]
        %s209 = sld [smem:[#allocation4 + $0x21]]
        %s210 = sld [smem:[#allocation4 + $0x22]]
        %s211 = sld [smem:[#allocation4 + $0x23]]
        %s212 = sld [smem:[#allocation4 + $0x24]]
        %s213 = sld [smem:[#allocation4 + $0x25]]
        %s214 = sld [smem:[#allocation4 + $0x26]]
        %s215 = sld [smem:[#allocation4 + $0x27]]
        %s216 = sld [smem:[#allocation4 + $0x28]]
        %s217 = sld [smem:[#allocation4 + $0x29]]
        %s218 = sld [smem:[#allocation4 + $0x2a]]
        %s219 = sld [smem:[#allocation4 + $0x2b]]
        %s220 = sld [smem:[#allocation4 + $0x2c]]
        %s221 = sld [smem:[#allocation4 + $0x2d]]
        %s222 = sld [smem:[#allocation4 + $0x2e]]
        %s223 = sld [smem:[#allocation4 + $0x2f]]
        %s224 = sld [smem:[#allocation4 + $0x30]]
        %s225 = sld [smem:[#allocation4 + $0x31]]
        %s226 = sld [smem:[#allocation4 + $0x32]]
        %s227 = sld [smem:[#allocation4 + $0x33]]
        %s228 = sld [smem:[#allocation4 + $0x34]]
        %s229 = sld [smem:[#allocation4 + $0x35]]
        %s230 = sld [smem:[#allocation4 + $0x36]]
        %s231 = sld [smem:[#allocation4 + $0x37]]
        %s232 = sld [smem:[#allocation4 + $0x38]]
        %s233 = sld [smem:[#allocation4 + $0x39]]
        %s234 = sld [smem:[#allocation4 + $0x3a]]
        %s235 = sld [smem:[#allocation4 + $0x3b]]
        %s236 = sld [smem:[#allocation4 + $0x3c]]
        %s237 = sld [smem:[#allocation4 + $0x3d]]
        %s238 = sld [smem:[#allocation4 + $0x3e]]
        %s239 = sld [smem:[#allocation4 + $0x3f]]
        %s240 = sld [smem:[#allocation4 + $0x40]]
        %s241 = sld [smem:[#allocation4 + $0x41]]
        %s242 = sld [smem:[#allocation4 + $0x42]]
        %s243 = sld [smem:[#allocation4 + $0x43]]
        %s244 = sld [smem:[#allocation4 + $0x44]]
        %s245 = sld [smem:[#allocation4 + $0x45]]
        %s246 = sld [smem:[#allocation4 + $0x46]]
        %s247 = sld [smem:[#allocation4 + $0x47]]
        %s248 = sld [smem:[#allocation4 + $0x48]]
        %s249 = sld [smem:[#allocation4 + $0x49]]
        %s250 = sld [smem:[#allocation4 + $0x4a]]
        %s251 = sld [smem:[#allocation4 + $0x4b]]
        %s252 = sld [smem:[#allocation4 + $0x4c]]
        %s253 = sld [smem:[#allocation4 + $0x4d]]
        %s254 = sld [smem:[#allocation4 + $0x4e]]
        %s255 = sld [smem:[#allocation4 + $0x4f]]
        %s256 = sld [smem:[#allocation4 + $0x50]]
        %s257 = sld [smem:[#allocation4 + $0x51]]
        %s258 = sld [smem:[#allocation4 + $0x52]]
        %s259 = sld [smem:[#allocation4 + $0x53]]
        %s260 = sld [smem:[#allocation4 + $0x54]]
        %s261 = sld [smem:[#allocation4 + $0x55]]
        %s262 = sld [smem:[#allocation4 + $0x56]]
        %s263 = sld [smem:[#allocation4 + $0x57]]
        %s264 = sld [smem:[#allocation4 + $0x58]]
        %s265 = sld [smem:[#allocation4 + $0x59]]
        %s266 = sld [smem:[#allocation4 + $0x5a]]
        %s267 = sld [smem:[#allocation4 + $0x5b]]
        %s268 = sld [smem:[#allocation4 + $0x5c]]
        %s269 = sld [smem:[#allocation4 + $0x5d]]
        %s270 = sld [smem:[#allocation4 + $0x5e]]
        %s271 = sld [smem:[#allocation4 + $0x5f]]
        %s272 = sld [smem:[#allocation4 + $0x60]]
        %s273 = sld [smem:[#allocation4 + $0x61]]
        %v274 = vlaneseq
        %v275 = vand.u32 %v274, 127
        %v276 = vadd.s32 %v275, 128
        %vm277 = vcmp.lt.s32.totalorder %v275, 0
        %v278 = vsub.s32 0, %v275
        %v279 = vsel %vm277, %v278, %v275
        %v280 = vshrl.u32 %v279, 4
        %v281 = vand.u32 %v279, 15
        %v282 = vsub.s32 0, %v281
        %v283 = vsel %vm277, %v282, %v281
        %vm284 = vcmp.lt.s32.totalorder %v276, 0
        %v285 = vsub.s32 0, %v276
        %v286 = vsel %vm284, %v285, %v276
        %v287 = vshrl.u32 %v286, 4
        %v288 = vand.u32 %v286, 15
        %v289 = vsub.s32 0, %v288
        %v290 = vsel %vm284, %v289, %v288
        %vm291 = vcmp.ne.s32.totalorder %v283, 0
        %vm292 = vcmp.ne.s32.totalorder %v290, 0
        %vm293 = vcmp.lt.s32.totalorder %v283, 0
        %vm294 = vcmp.lt.s32.totalorder %v290, 0
        %vm295 = vmand %vm293, %vm291
        %vm296 = vmand %vm294, %vm292
        %v297 = vadd.s32 %v283, 16
        %v298 = vadd.s32 %v290, 16
        %v299 = vsel %vm295, %v297, %v283
        %v300 = vsel %vm296, %v298, %v290
        %vm301 = vcmp.ge.s32.totalorder %v299, 3
        %vm302 = vcmp.ge.s32.totalorder %v300, 3
        %vm303 = vcmp.lt.s32.totalorder %v299, 16
        %vm304 = vcmp.lt.s32.totalorder %v300, 16
        %vm305 = vmand %vm301, %vm303
        %vm306 = vmand %vm302, %vm304
        %vm307 = vcmp.ge.s32.totalorder %v299, 2
        %vm308 = vcmp.ge.s32.totalorder %v300, 2
        %vm309 = vmand %vm307, %vm303
        %vm310 = vmand %vm308, %vm304
        %vm311 = vcmp.ge.s32.totalorder %v299, 1
        %vm312 = vcmp.ge.s32.totalorder %v300, 1
        %vm313 = vmand %vm311, %vm303
        %vm314 = vmand %vm312, %vm304
        %vm315 = vcmp.ge.s32.totalorder %v299, 0
        %vm316 = vcmp.ge.s32.totalorder %v300, 0
        %vm317 = vcmp.lt.s32.totalorder %v299, 15
        %vm318 = vcmp.lt.s32.totalorder %v300, 15
        %vm319 = vmand %vm315, %vm317
        %vm320 = vmand %vm316, %vm318
        %vm321 = vcmp.lt.s32.totalorder %v299, 14
        %vm322 = vcmp.lt.s32.totalorder %v300, 14
        %vm323 = vmand %vm315, %vm321
        %vm324 = vmand %vm316, %vm322
        %vm325 = vcmp.lt.s32.totalorder %v299, 13
        %vm326 = vcmp.lt.s32.totalorder %v300, 13
        %vm327 = vmand %vm315, %vm325
        %vm328 = vmand %vm316, %vm326
        %v329 = vlaneseq
        %vm330 = vcmp.ge.s32.totalorder %v329, 0
        %vm331 = vcmp.lt.s32.totalorder %v329, 128
        %vm332 = vmand %vm330, %vm331
        %333 = vst.msk [vmem:[#allocation2 + $0x2] sm:$0x1] %vm332, 0.0
        %334 = vst.msk [vmem:[#allocation3 + $0x2] sm:$0x1] %vm332, 0.0
        %v335 = vld [vmem:[%s153] sm:$0xff]
        %337 = vst [vmem:[#allocation1] ss:$2 sm:$0xff] %v335
        %v338 = vld.sshfl [vmem:[#allocation1] sm:$0xff pattern:$0x75316420]
        %v339 = vld.sshfl [vmem:[#allocation1 + $0x8] sm:$0xff pattern:$0x75316420]
        %vm342 = vcmask 1043456
        %v343 = vsel %vm342, %v338, 0.0
        %v344 = vrot.slane %v343, 4
        %v345 = vadd.f32 %v343, %v344
        %v346 = vrot.slane %v345, 2
        %v347 = vadd.f32 %v345, %v346
        %v348 = vrot.slane %v347, 1
        %v349 = vadd.f32 %v347, %v348
        %v350 = vsel %vm342, %v339, 0.0
        %v351 = vrot.slane %v350, 4
        %v352 = vadd.f32 %v350, %v351
        %v353 = vrot.slane %v352, 2
        %v354 = vadd.f32 %v352, %v353
        %v355 = vrot.slane %v354, 1
        %v356 = vadd.f32 %v354, %v355
        %357 = vst [vmem:[#allocation1] ss:$2 sm:$0xff] %v335
        %v358 = vld.sshfl [vmem:[#allocation1] sm:$0xff pattern:$0x75316420]
        %v359 = vld.sshfl [vmem:[#allocation1 + $0x8] sm:$0xff pattern:$0x75316420]
        %v362 = vsel %vm342, %v358, -inf
        %v363 = vrot.slane %v362, 4
        %v364 = vmax.f32 %v362, %v363
        %v365 = vrot.slane %v364, 2
        %v366 = vmax.f32 %v364, %v365
        %v367 = vrot.slane %v366, 1
        %v368 = vmax.f32 %v366, %v367
        %v369 = vsel %vm342, %v359, -inf
        %v370 = vrot.slane %v369, 4
        %v371 = vmax.f32 %v369, %v370
        %v372 = vrot.slane %v371, 2
        %v373 = vmax.f32 %v371, %v372
        %v374 = vrot.slane %v373, 1
        %v375 = vmax.f32 %v373, %v374
        %v378 = vrot.slane %v356, 7
        %vm379 = vcmask 1040384
        %v380 = vsel %vm379, %v349, %v378
        %vm382 = vcmp.lt.s32.totalorder %v329, 256
        %vm383 = vmand %vm330, %vm382
        %384 = vst.msk [vmem:[#allocation2] sm:$0x3] %vm383, %v380
        %v387 = vrot.slane %v375, 7
        %v388 = vsel %vm379, %v368, %v387
        %390 = vst.msk [vmem:[#allocation3] sm:$0x3] %vm383, %v388
        %v391 = vld [vmem:[#allocation2] sm:$0x7]
        %v392 = vld [vmem:[#allocation3] sm:$0x7]
        %v394 = vperm.slane %v391, 0
        %v395 = vperm.slane %v391, 1
        %v396 = vperm.slane %v391, 2
        %400 = vrot.lane.b32.xlu0 %v394, 51
        %v401 = vpop.permute.xlu0 %400
        %402 = vrot.lane.b32.xlu0 %v395, 51
        %v403 = vpop.permute.xlu0 %402
        %404 = vrot.lane.b32.xlu0 %v396, 51
        %v405 = vpop.permute.xlu0 %404
        %vm406 = vcmp.lt.s32.totalorder %v275, 51
        %v407 = vsel %vm406, %v401, %v403
        %v408 = vsel %vm406, %v405, %v401
        %v410 = vperm.slane %v392, 0
        %v411 = vperm.slane %v392, 1
        %v412 = vperm.slane %v392, 2
        %416 = vrot.lane.b32.xlu0 %v410, 51
        %v417 = vpop.permute.xlu0 %416
        %418 = vrot.lane.b32.xlu0 %v411, 51
        %v419 = vpop.permute.xlu0 %418
        %420 = vrot.lane.b32.xlu0 %v412, 51
        %v421 = vpop.permute.xlu0 %420
        %v422 = vsel %vm406, %v417, %v419
        %v423 = vsel %vm406, %v421, %v417
        %v424 = vstv %s176
        %v425 = vmul.f32 %v424, %v408
        %v426 = vmul.f32 %v424, %v407
        %v427 = vstv %s225
        %v428 = vmul.f32 %v427, %v423
        %v429 = vmul.f32 %v427, %v422
        %v430 = vadd.f32 %v425, %v428
        %v431 = vadd.f32 %v426, %v429
        %432 = vrot.lane.b32.xlu0 %v394, 35
        %v433 = vpop.permute.xlu0 %432
        %434 = vrot.lane.b32.xlu0 %v395, 35
        %v435 = vpop.permute.xlu0 %434
        %436 = vrot.lane.b32.xlu0 %v396, 35
        %v437 = vpop.permute.xlu0 %436
        %vm438 = vcmp.lt.s32.totalorder %v275, 35
        %v439 = vsel %vm438, %v433, %v435
        %v440 = vsel %vm438, %v437, %v433
        %441 = vrot.lane.b32.xlu0 %v410, 35
        %v442 = vpop.permute.xlu0 %441
        %443 = vrot.lane.b32.xlu0 %v411, 35
        %v444 = vpop.permute.xlu0 %443
        %445 = vrot.lane.b32.xlu0 %v412, 35
        %v446 = vpop.permute.xlu0 %445
        %v447 = vsel %vm438, %v442, %v444
        %v448 = vsel %vm438, %v446, %v442
        %v449 = vstv %s183
        %v450 = vmul.f32 %v449, %v440
        %v451 = vmul.f32 %v449, %v439
        %v452 = vstv %s232
        %v453 = vmul.f32 %v452, %v448
        %v454 = vmul.f32 %v452, %v447
        %v455 = vadd.f32 %v450, %v453
        %v456 = vadd.f32 %v451, %v454
        %457 = vrot.lane.b32.xlu0 %v394, 19
        %v458 = vpop.permute.xlu0 %457
        %459 = vrot.lane.b32.xlu0 %v395, 19
        %v460 = vpop.permute.xlu0 %459
        %461 = vrot.lane.b32.xlu0 %v396, 19
        %v462 = vpop.permute.xlu0 %461
        %vm463 = vcmp.lt.s32.totalorder %v275, 19
        %v464 = vsel %vm463, %v458, %v460
        %v465 = vsel %vm463, %v462, %v458
        %466 = vrot.lane.b32.xlu0 %v410, 19
        %v467 = vpop.permute.xlu0 %466
        %468 = vrot.lane.b32.xlu0 %v411, 19
        %v469 = vpop.permute.xlu0 %468
        %470 = vrot.lane.b32.xlu0 %v412, 19
        %v471 = vpop.permute.xlu0 %470
        %v472 = vsel %vm463, %v467, %v469
        %v473 = vsel %vm463, %v471, %v467
        %v474 = vstv %s190
        %v475 = vmul.f32 %v474, %v465
        %v476 = vmul.f32 %v474, %v464
        %v477 = vstv %s239
        %v478 = vmul.f32 %v477, %v473
        %v479 = vmul.f32 %v477, %v472
        %v480 = vadd.f32 %v475, %v478
        %v481 = vadd.f32 %v476, %v479
        %v482 = vadd.f32 %v430, %v480
        %v483 = vadd.f32 %v431, %v481
        %484 = vrot.lane.b32.xlu0 %v394, 3
        %v485 = vpop.permute.xlu0 %484
        %486 = vrot.lane.b32.xlu0 %v395, 3
        %v487 = vpop.permute.xlu0 %486
        %488 = vrot.lane.b32.xlu0 %v396, 3
        %v489 = vpop.permute.xlu0 %488
        %vm490 = vcmp.lt.s32.totalorder %v275, 3
        %v491 = vsel %vm490, %v485, %v487
        %v492 = vsel %vm490, %v489, %v485
        %493 = vrot.lane.b32.xlu0 %v410, 3
        %v494 = vpop.permute.xlu0 %493
        %495 = vrot.lane.b32.xlu0 %v411, 3
        %v496 = vpop.permute.xlu0 %495
        %497 = vrot.lane.b32.xlu0 %v412, 3
        %v498 = vpop.permute.xlu0 %497
        %v499 = vsel %vm490, %v494, %v496
        %v500 = vsel %vm490, %v498, %v494
        %v501 = vstv %s197
        %v502 = vmul.f32 %v501, %v492
        %v503 = vmul.f32 %v501, %v491
        %v504 = vstv %s246
        %v505 = vmul.f32 %v504, %v500
        %v506 = vmul.f32 %v504, %v499
        %v507 = vadd.f32 %v502, %v505
        %v508 = vadd.f32 %v503, %v506
        %v509 = vadd.f32 %v455, %v507
        %v510 = vadd.f32 %v456, %v508
        %511 = vrot.lane.b32.xlu0 %v394, 115
        %v512 = vpop.permute.xlu0 %511
        %513 = vrot.lane.b32.xlu0 %v395, 115
        %v514 = vpop.permute.xlu0 %513
        %515 = vrot.lane.b32.xlu0 %v396, 115
        %v516 = vpop.permute.xlu0 %515
        %vm517 = vcmp.lt.s32.totalorder %v275, 115
        %v518 = vsel %vm517, %v514, %v516
        %v519 = vsel %vm517, %v512, %v514
        %520 = vrot.lane.b32.xlu0 %v410, 115
        %v521 = vpop.permute.xlu0 %520
        %522 = vrot.lane.b32.xlu0 %v411, 115
        %v523 = vpop.permute.xlu0 %522
        %524 = vrot.lane.b32.xlu0 %v412, 115
        %v525 = vpop.permute.xlu0 %524
        %v526 = vsel %vm517, %v523, %v525
        %v527 = vsel %vm517, %v521, %v523
        %v528 = vstv %s204
        %v529 = vmul.f32 %v528, %v519
        %v530 = vmul.f32 %v528, %v518
        %v531 = vstv %s253
        %v532 = vmul.f32 %v531, %v527
        %v533 = vmul.f32 %v531, %v526
        %v534 = vadd.f32 %v529, %v532
        %v535 = vadd.f32 %v530, %v533
        %v536 = vadd.f32 %v482, %v534
        %v537 = vadd.f32 %v483, %v535
        %538 = vrot.lane.b32.xlu0 %v394, 99
        %v539 = vpop.permute.xlu0 %538
        %540 = vrot.lane.b32.xlu0 %v395, 99
        %v541 = vpop.permute.xlu0 %540
        %542 = vrot.lane.b32.xlu0 %v396, 99
        %v543 = vpop.permute.xlu0 %542
        %vm544 = vcmp.lt.s32.totalorder %v275, 99
        %v545 = vsel %vm544, %v541, %v543
        %v546 = vsel %vm544, %v539, %v541
        %547 = vrot.lane.b32.xlu0 %v410, 99
        %v548 = vpop.permute.xlu0 %547
        %549 = vrot.lane.b32.xlu0 %v411, 99
        %v550 = vpop.permute.xlu0 %549
        %551 = vrot.lane.b32.xlu0 %v412, 99
        %v552 = vpop.permute.xlu0 %551
        %v553 = vsel %vm544, %v550, %v552
        %v554 = vsel %vm544, %v548, %v550
        %v555 = vstv %s211
        %v556 = vmul.f32 %v555, %v546
        %v557 = vmul.f32 %v555, %v545
        %v558 = vstv %s260
        %v559 = vmul.f32 %v558, %v554
        %v560 = vmul.f32 %v558, %v553
        %v561 = vadd.f32 %v556, %v559
        %v562 = vadd.f32 %v557, %v560
        %v563 = vadd.f32 %v509, %v561
        %v564 = vadd.f32 %v510, %v562
        %565 = vrot.lane.b32.xlu0 %v394, 83
        %v566 = vpop.permute.xlu0 %565
        %567 = vrot.lane.b32.xlu0 %v395, 83
        %v568 = vpop.permute.xlu0 %567
        %569 = vrot.lane.b32.xlu0 %v396, 83
        %v570 = vpop.permute.xlu0 %569
        %vm571 = vcmp.lt.s32.totalorder %v275, 83
        %v572 = vsel %vm571, %v568, %v570
        %v573 = vsel %vm571, %v566, %v568
        %574 = vrot.lane.b32.xlu0 %v410, 83
        %v575 = vpop.permute.xlu0 %574
        %576 = vrot.lane.b32.xlu0 %v411, 83
        %v577 = vpop.permute.xlu0 %576
        %578 = vrot.lane.b32.xlu0 %v412, 83
        %v579 = vpop.permute.xlu0 %578
        %v580 = vsel %vm571, %v577, %v579
        %v581 = vsel %vm571, %v575, %v577
        %v582 = vstv %s218
        %v583 = vmul.f32 %v582, %v573
        %v584 = vmul.f32 %v582, %v572
        %v585 = vstv %s267
        %v586 = vmul.f32 %v585, %v581
        %v587 = vmul.f32 %v585, %v580
        %v588 = vadd.f32 %v583, %v586
        %v589 = vadd.f32 %v584, %v587
        %v590 = vadd.f32 %v536, %v588
        %v591 = vadd.f32 %v537, %v589
        %v592 = vadd.f32 %v590, %v563
        %v593 = vadd.f32 %v591, %v564
        %v594 = vsel %vm305, %v592, 0.0
        %v595 = vsel %vm306, %v593, 0.0
        %596 = vrot.lane.b32.xlu0 %v394, 50
        %v597 = vpop.permute.xlu0 %596
        %598 = vrot.lane.b32.xlu0 %v395, 50
        %v599 = vpop.permute.xlu0 %598
        %600 = vrot.lane.b32.xlu0 %v396, 50
        %v601 = vpop.permute.xlu0 %600
        %vm602 = vcmp.lt.s32.totalorder %v275, 50
        %v603 = vsel %vm602, %v597, %v599
        %v604 = vsel %vm602, %v601, %v597
        %605 = vrot.lane.b32.xlu0 %v410, 50
        %v606 = vpop.permute.xlu0 %605
        %607 = vrot.lane.b32.xlu0 %v411, 50
        %v608 = vpop.permute.xlu0 %607
        %609 = vrot.lane.b32.xlu0 %v412, 50
        %v610 = vpop.permute.xlu0 %609
        %v611 = vsel %vm602, %v606, %v608
        %v612 = vsel %vm602, %v610, %v606
        %v613 = vstv %s177
        %v614 = vmul.f32 %v613, %v604
        %v615 = vmul.f32 %v613, %v603
        %v616 = vstv %s226
        %v617 = vmul.f32 %v616, %v612
        %v618 = vmul.f32 %v616, %v611
        %v619 = vadd.f32 %v614, %v617
        %v620 = vadd.f32 %v615, %v618
        %621 = vrot.lane.b32.xlu0 %v394, 34
        %v622 = vpop.permute.xlu0 %621
        %623 = vrot.lane.b32.xlu0 %v395, 34
        %v624 = vpop.permute.xlu0 %623
        %625 = vrot.lane.b32.xlu0 %v396, 34
        %v626 = vpop.permute.xlu0 %625
        %vm627 = vcmp.lt.s32.totalorder %v275, 34
        %v628 = vsel %vm627, %v622, %v624
        %v629 = vsel %vm627, %v626, %v622
        %630 = vrot.lane.b32.xlu0 %v410, 34
        %v631 = vpop.permute.xlu0 %630
        %632 = vrot.lane.b32.xlu0 %v411, 34
        %v633 = vpop.permute.xlu0 %632
        %634 = vrot.lane.b32.xlu0 %v412, 34
        %v635 = vpop.permute.xlu0 %634
        %v636 = vsel %vm627, %v631, %v633
        %v637 = vsel %vm627, %v635, %v631
        %v638 = vstv %s184
        %v639 = vmul.f32 %v638, %v629
        %v640 = vmul.f32 %v638, %v628
        %v641 = vstv %s233
        %v642 = vmul.f32 %v641, %v637
        %v643 = vmul.f32 %v641, %v636
        %v644 = vadd.f32 %v639, %v642
        %v645 = vadd.f32 %v640, %v643
        %646 = vrot.lane.b32.xlu0 %v394, 18
        %v647 = vpop.permute.xlu0 %646
        %648 = vrot.lane.b32.xlu0 %v395, 18
        %v649 = vpop.permute.xlu0 %648
        %650 = vrot.lane.b32.xlu0 %v396, 18
        %v651 = vpop.permute.xlu0 %650
        %vm652 = vcmp.lt.s32.totalorder %v275, 18
        %v653 = vsel %vm652, %v647, %v649
        %v654 = vsel %vm652, %v651, %v647
        %655 = vrot.lane.b32.xlu0 %v410, 18
        %v656 = vpop.permute.xlu0 %655
        %657 = vrot.lane.b32.xlu0 %v411, 18
        %v658 = vpop.permute.xlu0 %657
        %659 = vrot.lane.b32.xlu0 %v412, 18
        %v660 = vpop.permute.xlu0 %659
        %v661 = vsel %vm652, %v656, %v658
        %v662 = vsel %vm652, %v660, %v656
        %v663 = vstv %s191
        %v664 = vmul.f32 %v663, %v654
        %v665 = vmul.f32 %v663, %v653
        %v666 = vstv %s240
        %v667 = vmul.f32 %v666, %v662
        %v668 = vmul.f32 %v666, %v661
        %v669 = vadd.f32 %v664, %v667
        %v670 = vadd.f32 %v665, %v668
        %v671 = vadd.f32 %v619, %v669
        %v672 = vadd.f32 %v620, %v670
        %673 = vrot.lane.b32.xlu0 %v394, 2
        %v674 = vpop.permute.xlu0 %673
        %675 = vrot.lane.b32.xlu0 %v395, 2
        %v676 = vpop.permute.xlu0 %675
        %677 = vrot.lane.b32.xlu0 %v396, 2
        %v678 = vpop.permute.xlu0 %677
        %vm679 = vcmp.lt.s32.totalorder %v275, 2
        %v680 = vsel %vm679, %v674, %v676
        %v681 = vsel %vm679, %v678, %v674
        %682 = vrot.lane.b32.xlu0 %v410, 2
        %v683 = vpop.permute.xlu0 %682
        %684 = vrot.lane.b32.xlu0 %v411, 2
        %v685 = vpop.permute.xlu0 %684
        %686 = vrot.lane.b32.xlu0 %v412, 2
        %v687 = vpop.permute.xlu0 %686
        %v688 = vsel %vm679, %v683, %v685
        %v689 = vsel %vm679, %v687, %v683
        %v690 = vstv %s198
        %v691 = vmul.f32 %v690, %v681
        %v692 = vmul.f32 %v690, %v680
        %v693 = vstv %s247
        %v694 = vmul.f32 %v693, %v689
        %v695 = vmul.f32 %v693, %v688
        %v696 = vadd.f32 %v691, %v694
        %v697 = vadd.f32 %v692, %v695
        %v698 = vadd.f32 %v644, %v696
        %v699 = vadd.f32 %v645, %v697
        %700 = vrot.lane.b32.xlu0 %v394, 114
        %v701 = vpop.permute.xlu0 %700
        %702 = vrot.lane.b32.xlu0 %v395, 114
        %v703 = vpop.permute.xlu0 %702
        %704 = vrot.lane.b32.xlu0 %v396, 114
        %v705 = vpop.permute.xlu0 %704
        %vm706 = vcmp.lt.s32.totalorder %v275, 114
        %v707 = vsel %vm706, %v703, %v705
        %v708 = vsel %vm706, %v701, %v703
        %709 = vrot.lane.b32.xlu0 %v410, 114
        %v710 = vpop.permute.xlu0 %709
        %711 = vrot.lane.b32.xlu0 %v411, 114
        %v712 = vpop.permute.xlu0 %711
        %713 = vrot.lane.b32.xlu0 %v412, 114
        %v714 = vpop.permute.xlu0 %713
        %v715 = vsel %vm706, %v712, %v714
        %v716 = vsel %vm706, %v710, %v712
        %v717 = vstv %s205
        %v718 = vmul.f32 %v717, %v708
        %v719 = vmul.f32 %v717, %v707
        %v720 = vstv %s254
        %v721 = vmul.f32 %v720, %v716
        %v722 = vmul.f32 %v720, %v715
        %v723 = vadd.f32 %v718, %v721
        %v724 = vadd.f32 %v719, %v722
        %v725 = vadd.f32 %v671, %v723
        %v726 = vadd.f32 %v672, %v724
        %727 = vrot.lane.b32.xlu0 %v394, 98
        %v728 = vpop.permute.xlu0 %727
        %729 = vrot.lane.b32.xlu0 %v395, 98
        %v730 = vpop.permute.xlu0 %729
        %731 = vrot.lane.b32.xlu0 %v396, 98
        %v732 = vpop.permute.xlu0 %731
        %vm733 = vcmp.lt.s32.totalorder %v275, 98
        %v734 = vsel %vm733, %v730, %v732
        %v735 = vsel %vm733, %v728, %v730
        %736 = vrot.lane.b32.xlu0 %v410, 98
        %v737 = vpop.permute.xlu0 %736
        %738 = vrot.lane.b32.xlu0 %v411, 98
        %v739 = vpop.permute.xlu0 %738
        %740 = vrot.lane.b32.xlu0 %v412, 98
        %v741 = vpop.permute.xlu0 %740
        %v742 = vsel %vm733, %v739, %v741
        %v743 = vsel %vm733, %v737, %v739
        %v744 = vstv %s212
        %v745 = vmul.f32 %v744, %v735
        %v746 = vmul.f32 %v744, %v734
        %v747 = vstv %s261
        %v748 = vmul.f32 %v747, %v743
        %v749 = vmul.f32 %v747, %v742
        %v750 = vadd.f32 %v745, %v748
        %v751 = vadd.f32 %v746, %v749
        %v752 = vadd.f32 %v698, %v750
        %v753 = vadd.f32 %v699, %v751
        %754 = vrot.lane.b32.xlu0 %v394, 82
        %v755 = vpop.permute.xlu0 %754
        %756 = vrot.lane.b32.xlu0 %v395, 82
        %v757 = vpop.permute.xlu0 %756
        %758 = vrot.lane.b32.xlu0 %v396, 82
        %v759 = vpop.permute.xlu0 %758
        %vm760 = vcmp.lt.s32.totalorder %v275, 82
        %v761 = vsel %vm760, %v757, %v759
        %v762 = vsel %vm760, %v755, %v757
        %763 = vrot.lane.b32.xlu0 %v410, 82
        %v764 = vpop.permute.xlu0 %763
        %765 = vrot.lane.b32.xlu0 %v411, 82
        %v766 = vpop.permute.xlu0 %765
        %767 = vrot.lane.b32.xlu0 %v412, 82
        %v768 = vpop.permute.xlu0 %767
        %v769 = vsel %vm760, %v766, %v768
        %v770 = vsel %vm760, %v764, %v766
        %v771 = vstv %s219
        %v772 = vmul.f32 %v771, %v762
        %v773 = vmul.f32 %v771, %v761
        %v774 = vstv %s268
        %v775 = vmul.f32 %v774, %v770
        %v776 = vmul.f32 %v774, %v769
        %v777 = vadd.f32 %v772, %v775
        %v778 = vadd.f32 %v773, %v776
        %v779 = vadd.f32 %v725, %v777
        %v780 = vadd.f32 %v726, %v778
        %v781 = vadd.f32 %v779, %v752
        %v782 = vadd.f32 %v780, %v753
        %v783 = vsel %vm309, %v781, 0.0
        %v784 = vsel %vm310, %v782, 0.0
        %785 = vrot.lane.b32.xlu0 %v394, 49
        %v786 = vpop.permute.xlu0 %785
        %787 = vrot.lane.b32.xlu0 %v395, 49
        %v788 = vpop.permute.xlu0 %787
        %789 = vrot.lane.b32.xlu0 %v396, 49
        %v790 = vpop.permute.xlu0 %789
        %vm791 = vcmp.lt.s32.totalorder %v275, 49
        %v792 = vsel %vm791, %v786, %v788
        %v793 = vsel %vm791, %v790, %v786
        %794 = vrot.lane.b32.xlu0 %v410, 49
        %v795 = vpop.permute.xlu0 %794
        %796 = vrot.lane.b32.xlu0 %v411, 49
        %v797 = vpop.permute.xlu0 %796
        %798 = vrot.lane.b32.xlu0 %v412, 49
        %v799 = vpop.permute.xlu0 %798
        %v800 = vsel %vm791, %v795, %v797
        %v801 = vsel %vm791, %v799, %v795
        %v802 = vstv %s178
        %v803 = vmul.f32 %v802, %v793
        %v804 = vmul.f32 %v802, %v792
        %v805 = vstv %s227
        %v806 = vmul.f32 %v805, %v801
        %v807 = vmul.f32 %v805, %v800
        %v808 = vadd.f32 %v803, %v806
        %v809 = vadd.f32 %v804, %v807
        %810 = vrot.lane.b32.xlu0 %v394, 33
        %v811 = vpop.permute.xlu0 %810
        %812 = vrot.lane.b32.xlu0 %v395, 33
        %v813 = vpop.permute.xlu0 %812
        %814 = vrot.lane.b32.xlu0 %v396, 33
        %v815 = vpop.permute.xlu0 %814
        %vm816 = vcmp.lt.s32.totalorder %v275, 33
        %v817 = vsel %vm816, %v811, %v813
        %v818 = vsel %vm816, %v815, %v811
        %819 = vrot.lane.b32.xlu0 %v410, 33
        %v820 = vpop.permute.xlu0 %819
        %821 = vrot.lane.b32.xlu0 %v411, 33
        %v822 = vpop.permute.xlu0 %821
        %823 = vrot.lane.b32.xlu0 %v412, 33
        %v824 = vpop.permute.xlu0 %823
        %v825 = vsel %vm816, %v820, %v822
        %v826 = vsel %vm816, %v824, %v820
        %v827 = vstv %s185
        %v828 = vmul.f32 %v827, %v818
        %v829 = vmul.f32 %v827, %v817
        %v830 = vstv %s234
        %v831 = vmul.f32 %v830, %v826
        %v832 = vmul.f32 %v830, %v825
        %v833 = vadd.f32 %v828, %v831
        %v834 = vadd.f32 %v829, %v832
        %835 = vrot.lane.b32.xlu0 %v394, 17
        %v836 = vpop.permute.xlu0 %835
        %837 = vrot.lane.b32.xlu0 %v395, 17
        %v838 = vpop.permute.xlu0 %837
        %839 = vrot.lane.b32.xlu0 %v396, 17
        %v840 = vpop.permute.xlu0 %839
        %vm841 = vcmp.lt.s32.totalorder %v275, 17
        %v842 = vsel %vm841, %v836, %v838
        %v843 = vsel %vm841, %v840, %v836
        %844 = vrot.lane.b32.xlu0 %v410, 17
        %v845 = vpop.permute.xlu0 %844
        %846 = vrot.lane.b32.xlu0 %v411, 17
        %v847 = vpop.permute.xlu0 %846
        %848 = vrot.lane.b32.xlu0 %v412, 17
        %v849 = vpop.permute.xlu0 %848
        %v850 = vsel %vm841, %v845, %v847
        %v851 = vsel %vm841, %v849, %v845
        %v852 = vstv %s192
        %v853 = vmul.f32 %v852, %v843
        %v854 = vmul.f32 %v852, %v842
        %v855 = vstv %s241
        %v856 = vmul.f32 %v855, %v851
        %v857 = vmul.f32 %v855, %v850
        %v858 = vadd.f32 %v853, %v856
        %v859 = vadd.f32 %v854, %v857
        %v860 = vadd.f32 %v808, %v858
        %v861 = vadd.f32 %v809, %v859
        %862 = vrot.lane.b32.xlu0 %v394, 1
        %v863 = vpop.permute.xlu0 %862
        %864 = vrot.lane.b32.xlu0 %v395, 1
        %v865 = vpop.permute.xlu0 %864
        %866 = vrot.lane.b32.xlu0 %v396, 1
        %v867 = vpop.permute.xlu0 %866
        %vm868 = vcmp.lt.s32.totalorder %v275, 1
        %v869 = vsel %vm868, %v863, %v865
        %v870 = vsel %vm868, %v867, %v863
        %871 = vrot.lane.b32.xlu0 %v410, 1
        %v872 = vpop.permute.xlu0 %871
        %873 = vrot.lane.b32.xlu0 %v411, 1
        %v874 = vpop.permute.xlu0 %873
        %875 = vrot.lane.b32.xlu0 %v412, 1
        %v876 = vpop.permute.xlu0 %875
        %v877 = vsel %vm868, %v872, %v874
        %v878 = vsel %vm868, %v876, %v872
        %v879 = vstv %s199
        %v880 = vmul.f32 %v879, %v870
        %v881 = vmul.f32 %v879, %v869
        %v882 = vstv %s248
        %v883 = vmul.f32 %v882, %v878
        %v884 = vmul.f32 %v882, %v877
        %v885 = vadd.f32 %v880, %v883
        %v886 = vadd.f32 %v881, %v884
        %v887 = vadd.f32 %v833, %v885
        %v888 = vadd.f32 %v834, %v886
        %889 = vrot.lane.b32.xlu0 %v394, 113
        %v890 = vpop.permute.xlu0 %889
        %891 = vrot.lane.b32.xlu0 %v395, 113
        %v892 = vpop.permute.xlu0 %891
        %893 = vrot.lane.b32.xlu0 %v396, 113
        %v894 = vpop.permute.xlu0 %893
        %vm895 = vcmp.lt.s32.totalorder %v275, 113
        %v896 = vsel %vm895, %v892, %v894
        %v897 = vsel %vm895, %v890, %v892
        %898 = vrot.lane.b32.xlu0 %v410, 113
        %v899 = vpop.permute.xlu0 %898
        %900 = vrot.lane.b32.xlu0 %v411, 113
        %v901 = vpop.permute.xlu0 %900
        %902 = vrot.lane.b32.xlu0 %v412, 113
        %v903 = vpop.permute.xlu0 %902
        %v904 = vsel %vm895, %v901, %v903
        %v905 = vsel %vm895, %v899, %v901
        %v906 = vstv %s206
        %v907 = vmul.f32 %v906, %v897
        %v908 = vmul.f32 %v906, %v896
        %v909 = vstv %s255
        %v910 = vmul.f32 %v909, %v905
        %v911 = vmul.f32 %v909, %v904
        %v912 = vadd.f32 %v907, %v910
        %v913 = vadd.f32 %v908, %v911
        %v914 = vadd.f32 %v860, %v912
        %v915 = vadd.f32 %v861, %v913
        %916 = vrot.lane.b32.xlu0 %v394, 97
        %v917 = vpop.permute.xlu0 %916
        %918 = vrot.lane.b32.xlu0 %v395, 97
        %v919 = vpop.permute.xlu0 %918
        %920 = vrot.lane.b32.xlu0 %v396, 97
        %v921 = vpop.permute.xlu0 %920
        %vm922 = vcmp.lt.s32.totalorder %v275, 97
        %v923 = vsel %vm922, %v919, %v921
        %v924 = vsel %vm922, %v917, %v919
        %925 = vrot.lane.b32.xlu0 %v410, 97
        %v926 = vpop.permute.xlu0 %925
        %927 = vrot.lane.b32.xlu0 %v411, 97
        %v928 = vpop.permute.xlu0 %927
        %929 = vrot.lane.b32.xlu0 %v412, 97
        %v930 = vpop.permute.xlu0 %929
        %v931 = vsel %vm922, %v928, %v930
        %v932 = vsel %vm922, %v926, %v928
        %v933 = vstv %s213
        %v934 = vmul.f32 %v933, %v924
        %v935 = vmul.f32 %v933, %v923
        %v936 = vstv %s262
        %v937 = vmul.f32 %v936, %v932
        %v938 = vmul.f32 %v936, %v931
        %v939 = vadd.f32 %v934, %v937
        %v940 = vadd.f32 %v935, %v938
        %v941 = vadd.f32 %v887, %v939
        %v942 = vadd.f32 %v888, %v940
        %943 = vrot.lane.b32.xlu0 %v394, 81
        %v944 = vpop.permute.xlu0 %943
        %945 = vrot.lane.b32.xlu0 %v395, 81
        %v946 = vpop.permute.xlu0 %945
        %947 = vrot.lane.b32.xlu0 %v396, 81
        %v948 = vpop.permute.xlu0 %947
        %vm949 = vcmp.lt.s32.totalorder %v275, 81
        %v950 = vsel %vm949, %v946, %v948
        %v951 = vsel %vm949, %v944, %v946
        %952 = vrot.lane.b32.xlu0 %v410, 81
        %v953 = vpop.permute.xlu0 %952
        %954 = vrot.lane.b32.xlu0 %v411, 81
        %v955 = vpop.permute.xlu0 %954
        %956 = vrot.lane.b32.xlu0 %v412, 81
        %v957 = vpop.permute.xlu0 %956
        %v958 = vsel %vm949, %v955, %v957
        %v959 = vsel %vm949, %v953, %v955
        %v960 = vstv %s220
        %v961 = vmul.f32 %v960, %v951
        %v962 = vmul.f32 %v960, %v950
        %v963 = vstv %s269
        %v964 = vmul.f32 %v963, %v959
        %v965 = vmul.f32 %v963, %v958
        %v966 = vadd.f32 %v961, %v964
        %v967 = vadd.f32 %v962, %v965
        %v968 = vadd.f32 %v914, %v966
        %v969 = vadd.f32 %v915, %v967
        %v970 = vadd.f32 %v968, %v941
        %v971 = vadd.f32 %v969, %v942
        %v972 = vsel %vm313, %v970, 0.0
        %v973 = vsel %vm314, %v971, 0.0
        %974 = vrot.lane.b32.xlu0 %v394, 48
        %v975 = vpop.permute.xlu0 %974
        %976 = vrot.lane.b32.xlu0 %v395, 48
        %v977 = vpop.permute.xlu0 %976
        %978 = vrot.lane.b32.xlu0 %v396, 48
        %v979 = vpop.permute.xlu0 %978
        %vm980 = vcmp.lt.s32.totalorder %v275, 48
        %v981 = vsel %vm980, %v975, %v977
        %v982 = vsel %vm980, %v979, %v975
        %983 = vrot.lane.b32.xlu0 %v410, 48
        %v984 = vpop.permute.xlu0 %983
        %985 = vrot.lane.b32.xlu0 %v411, 48
        %v986 = vpop.permute.xlu0 %985
        %987 = vrot.lane.b32.xlu0 %v412, 48
        %v988 = vpop.permute.xlu0 %987
        %v989 = vsel %vm980, %v984, %v986
        %v990 = vsel %vm980, %v988, %v984
        %v991 = vstv %s179
        %v992 = vmul.f32 %v991, %v982
        %v993 = vmul.f32 %v991, %v981
        %v994 = vstv %s228
        %v995 = vmul.f32 %v994, %v990
        %v996 = vmul.f32 %v994, %v989
        %v997 = vadd.f32 %v992, %v995
        %v998 = vadd.f32 %v993, %v996
        %999 = vrot.lane.b32.xlu0 %v394, 32
        %v1000 = vpop.permute.xlu0 %999
        %1001 = vrot.lane.b32.xlu0 %v395, 32
        %v1002 = vpop.permute.xlu0 %1001
        %1003 = vrot.lane.b32.xlu0 %v396, 32
        %v1004 = vpop.permute.xlu0 %1003
        %vm1005 = vcmp.lt.s32.totalorder %v275, 32
        %v1006 = vsel %vm1005, %v1000, %v1002
        %v1007 = vsel %vm1005, %v1004, %v1000
        %1008 = vrot.lane.b32.xlu0 %v410, 32
        %v1009 = vpop.permute.xlu0 %1008
        %1010 = vrot.lane.b32.xlu0 %v411, 32
        %v1011 = vpop.permute.xlu0 %1010
        %1012 = vrot.lane.b32.xlu0 %v412, 32
        %v1013 = vpop.permute.xlu0 %1012
        %v1014 = vsel %vm1005, %v1009, %v1011
        %v1015 = vsel %vm1005, %v1013, %v1009
        %v1016 = vstv %s186
        %v1017 = vmul.f32 %v1016, %v1007
        %v1018 = vmul.f32 %v1016, %v1006
        %v1019 = vstv %s235
        %v1020 = vmul.f32 %v1019, %v1015
        %v1021 = vmul.f32 %v1019, %v1014
        %v1022 = vadd.f32 %v1017, %v1020
        %v1023 = vadd.f32 %v1018, %v1021
        %1024 = vrot.lane.b32.xlu0 %v394, 16
        %v1025 = vpop.permute.xlu0 %1024
        %1026 = vrot.lane.b32.xlu0 %v395, 16
        %v1027 = vpop.permute.xlu0 %1026
        %1028 = vrot.lane.b32.xlu0 %v396, 16
        %v1029 = vpop.permute.xlu0 %1028
        %vm1030 = vcmp.lt.s32.totalorder %v275, 16
        %v1031 = vsel %vm1030, %v1025, %v1027
        %v1032 = vsel %vm1030, %v1029, %v1025
        %1033 = vrot.lane.b32.xlu0 %v410, 16
        %v1034 = vpop.permute.xlu0 %1033
        %1035 = vrot.lane.b32.xlu0 %v411, 16
        %v1036 = vpop.permute.xlu0 %1035
        %1037 = vrot.lane.b32.xlu0 %v412, 16
        %v1038 = vpop.permute.xlu0 %1037
        %v1039 = vsel %vm1030, %v1034, %v1036
        %v1040 = vsel %vm1030, %v1038, %v1034
        %v1041 = vstv %s193
        %v1042 = vmul.f32 %v1041, %v1032
        %v1043 = vmul.f32 %v1041, %v1031
        %v1044 = vstv %s242
        %v1045 = vmul.f32 %v1044, %v1040
        %v1046 = vmul.f32 %v1044, %v1039
        %v1047 = vadd.f32 %v1042, %v1045
        %v1048 = vadd.f32 %v1043, %v1046
        %v1049 = vadd.f32 %v997, %v1047
        %v1050 = vadd.f32 %v998, %v1048
        %v1051 = vstv %s200
        %v1052 = vmul.f32 %v1051, %v391
        %v1053 = vstv %s249
        %v1054 = vmul.f32 %v1053, %v392
        %v1055 = vadd.f32 %v1052, %v1054
        %v1057 = vperm.slane %v1055, 0
        %v1058 = vperm.slane %v1055, 1
        %v1061 = vadd.f32 %v1022, %v1057
        %v1062 = vadd.f32 %v1023, %v1058
        %1063 = vrot.lane.b32.xlu0 %v394, 112
        %v1064 = vpop.permute.xlu0 %1063
        %1065 = vrot.lane.b32.xlu0 %v395, 112
        %v1066 = vpop.permute.xlu0 %1065
        %1067 = vrot.lane.b32.xlu0 %v396, 112
        %v1068 = vpop.permute.xlu0 %1067
        %vm1069 = vcmp.lt.s32.totalorder %v275, 112
        %v1070 = vsel %vm1069, %v1066, %v1068
        %v1071 = vsel %vm1069, %v1064, %v1066
        %1072 = vrot.lane.b32.xlu0 %v410, 112
        %v1073 = vpop.permute.xlu0 %1072
        %1074 = vrot.lane.b32.xlu0 %v411, 112
        %v1075 = vpop.permute.xlu0 %1074
        %1076 = vrot.lane.b32.xlu0 %v412, 112
        %v1077 = vpop.permute.xlu0 %1076
        %v1078 = vsel %vm1069, %v1075, %v1077
        %v1079 = vsel %vm1069, %v1073, %v1075
        %v1080 = vstv %s207
        %v1081 = vmul.f32 %v1080, %v1071
        %v1082 = vmul.f32 %v1080, %v1070
        %v1083 = vstv %s256
        %v1084 = vmul.f32 %v1083, %v1079
        %v1085 = vmul.f32 %v1083, %v1078
        %v1086 = vadd.f32 %v1081, %v1084
        %v1087 = vadd.f32 %v1082, %v1085
        %v1088 = vadd.f32 %v1049, %v1086
        %v1089 = vadd.f32 %v1050, %v1087
        %1090 = vrot.lane.b32.xlu0 %v394, 96
        %v1091 = vpop.permute.xlu0 %1090
        %1092 = vrot.lane.b32.xlu0 %v395, 96
        %v1093 = vpop.permute.xlu0 %1092
        %1094 = vrot.lane.b32.xlu0 %v396, 96
        %v1095 = vpop.permute.xlu0 %1094
        %vm1096 = vcmp.lt.s32.totalorder %v275, 96
        %v1097 = vsel %vm1096, %v1093, %v1095
        %v1098 = vsel %vm1096, %v1091, %v1093
        %1099 = vrot.lane.b32.xlu0 %v410, 96
        %v1100 = vpop.permute.xlu0 %1099
        %1101 = vrot.lane.b32.xlu0 %v411, 96
        %v1102 = vpop.permute.xlu0 %1101
        %1103 = vrot.lane.b32.xlu0 %v412, 96
        %v1104 = vpop.permute.xlu0 %1103
        %v1105 = vsel %vm1096, %v1102, %v1104
        %v1106 = vsel %vm1096, %v1100, %v1102
        %v1107 = vstv %s214
        %v1108 = vmul.f32 %v1107, %v1098
        %v1109 = vmul.f32 %v1107, %v1097
        %v1110 = vstv %s263
        %v1111 = vmul.f32 %v1110, %v1106
        %v1112 = vmul.f32 %v1110, %v1105
        %v1113 = vadd.f32 %v1108, %v1111
        %v1114 = vadd.f32 %v1109, %v1112
        %v1115 = vadd.f32 %v1061, %v1113
        %v1116 = vadd.f32 %v1062, %v1114
        %1117 = vrot.lane.b32.xlu0 %v394, 80
        %v1118 = vpop.permute.xlu0 %1117
        %1119 = vrot.lane.b32.xlu0 %v395, 80
        %v1120 = vpop.permute.xlu0 %1119
        %1121 = vrot.lane.b32.xlu0 %v396, 80
        %v1122 = vpop.permute.xlu0 %1121
        %vm1123 = vcmp.lt.s32.totalorder %v275, 80
        %v1124 = vsel %vm1123, %v1120, %v1122
        %v1125 = vsel %vm1123, %v1118, %v1120
        %1126 = vrot.lane.b32.xlu0 %v410, 80
        %v1127 = vpop.permute.xlu0 %1126
        %1128 = vrot.lane.b32.xlu0 %v411, 80
        %v1129 = vpop.permute.xlu0 %1128
        %1130 = vrot.lane.b32.xlu0 %v412, 80
        %v1131 = vpop.permute.xlu0 %1130
        %v1132 = vsel %vm1123, %v1129, %v1131
        %v1133 = vsel %vm1123, %v1127, %v1129
        %v1134 = vstv %s221
        %v1135 = vmul.f32 %v1134, %v1125
        %v1136 = vmul.f32 %v1134, %v1124
        %v1137 = vstv %s270
        %v1138 = vmul.f32 %v1137, %v1133
        %v1139 = vmul.f32 %v1137, %v1132
        %v1140 = vadd.f32 %v1135, %v1138
        %v1141 = vadd.f32 %v1136, %v1139
        %v1142 = vadd.f32 %v1088, %v1140
        %v1143 = vadd.f32 %v1089, %v1141
        %v1144 = vadd.f32 %v1142, %v1115
        %v1145 = vadd.f32 %v1143, %v1116
        %1146 = vrot.lane.b32.xlu0 %v394, 47
        %v1147 = vpop.permute.xlu0 %1146
        %1148 = vrot.lane.b32.xlu0 %v395, 47
        %v1149 = vpop.permute.xlu0 %1148
        %1150 = vrot.lane.b32.xlu0 %v396, 47
        %v1151 = vpop.permute.xlu0 %1150
        %vm1152 = vcmp.lt.s32.totalorder %v275, 47
        %v1153 = vsel %vm1152, %v1147, %v1149
        %v1154 = vsel %vm1152, %v1151, %v1147
        %1155 = vrot.lane.b32.xlu0 %v410, 47
        %v1156 = vpop.permute.xlu0 %1155
        %1157 = vrot.lane.b32.xlu0 %v411, 47
        %v1158 = vpop.permute.xlu0 %1157
        %1159 = vrot.lane.b32.xlu0 %v412, 47
        %v1160 = vpop.permute.xlu0 %1159
        %v1161 = vsel %vm1152, %v1156, %v1158
        %v1162 = vsel %vm1152, %v1160, %v1156
        %v1163 = vstv %s180
        %v1164 = vmul.f32 %v1163, %v1154
        %v1165 = vmul.f32 %v1163, %v1153
        %v1166 = vstv %s229
        %v1167 = vmul.f32 %v1166, %v1162
        %v1168 = vmul.f32 %v1166, %v1161
        %v1169 = vadd.f32 %v1164, %v1167
        %v1170 = vadd.f32 %v1165, %v1168
        %1171 = vrot.lane.b32.xlu0 %v394, 31
        %v1172 = vpop.permute.xlu0 %1171
        %1173 = vrot.lane.b32.xlu0 %v395, 31
        %v1174 = vpop.permute.xlu0 %1173
        %1175 = vrot.lane.b32.xlu0 %v396, 31
        %v1176 = vpop.permute.xlu0 %1175
        %vm1177 = vcmp.lt.s32.totalorder %v275, 31
        %v1178 = vsel %vm1177, %v1172, %v1174
        %v1179 = vsel %vm1177, %v1176, %v1172
        %1180 = vrot.lane.b32.xlu0 %v410, 31
        %v1181 = vpop.permute.xlu0 %1180
        %1182 = vrot.lane.b32.xlu0 %v411, 31
        %v1183 = vpop.permute.xlu0 %1182
        %1184 = vrot.lane.b32.xlu0 %v412, 31
        %v1185 = vpop.permute.xlu0 %1184
        %v1186 = vsel %vm1177, %v1181, %v1183
        %v1187 = vsel %vm1177, %v1185, %v1181
        %v1188 = vstv %s187
        %v1189 = vmul.f32 %v1188, %v1179
        %v1190 = vmul.f32 %v1188, %v1178
        %v1191 = vstv %s236
        %v1192 = vmul.f32 %v1191, %v1187
        %v1193 = vmul.f32 %v1191, %v1186
        %v1194 = vadd.f32 %v1189, %v1192
        %v1195 = vadd.f32 %v1190, %v1193
        %1196 = vrot.lane.b32.xlu0 %v394, 15
        %v1197 = vpop.permute.xlu0 %1196
        %1198 = vrot.lane.b32.xlu0 %v395, 15
        %v1199 = vpop.permute.xlu0 %1198
        %1200 = vrot.lane.b32.xlu0 %v396, 15
        %v1201 = vpop.permute.xlu0 %1200
        %vm1202 = vcmp.lt.s32.totalorder %v275, 15
        %v1203 = vsel %vm1202, %v1197, %v1199
        %v1204 = vsel %vm1202, %v1201, %v1197
        %1205 = vrot.lane.b32.xlu0 %v410, 15
        %v1206 = vpop.permute.xlu0 %1205
        %1207 = vrot.lane.b32.xlu0 %v411, 15
        %v1208 = vpop.permute.xlu0 %1207
        %1209 = vrot.lane.b32.xlu0 %v412, 15
        %v1210 = vpop.permute.xlu0 %1209
        %v1211 = vsel %vm1202, %v1206, %v1208
        %v1212 = vsel %vm1202, %v1210, %v1206
        %v1213 = vstv %s194
        %v1214 = vmul.f32 %v1213, %v1204
        %v1215 = vmul.f32 %v1213, %v1203
        %v1216 = vstv %s243
        %v1217 = vmul.f32 %v1216, %v1212
        %v1218 = vmul.f32 %v1216, %v1211
        %v1219 = vadd.f32 %v1214, %v1217
        %v1220 = vadd.f32 %v1215, %v1218
        %v1221 = vadd.f32 %v1169, %v1219
        %v1222 = vadd.f32 %v1170, %v1220
        %1223 = vrot.lane.b32.xlu0 %v394, 127
        %v1224 = vpop.permute.xlu0 %1223
        %1225 = vrot.lane.b32.xlu0 %v395, 127
        %v1226 = vpop.permute.xlu0 %1225
        %1227 = vrot.lane.b32.xlu0 %v396, 127
        %v1228 = vpop.permute.xlu0 %1227
        %vm1229 = vcmp.lt.s32.totalorder %v275, 127
        %v1230 = vsel %vm1229, %v1226, %v1228
        %v1231 = vsel %vm1229, %v1224, %v1226
        %1232 = vrot.lane.b32.xlu0 %v410, 127
        %v1233 = vpop.permute.xlu0 %1232
        %1234 = vrot.lane.b32.xlu0 %v411, 127
        %v1235 = vpop.permute.xlu0 %1234
        %1236 = vrot.lane.b32.xlu0 %v412, 127
        %v1237 = vpop.permute.xlu0 %1236
        %v1238 = vsel %vm1229, %v1235, %v1237
        %v1239 = vsel %vm1229, %v1233, %v1235
        %v1240 = vstv %s201
        %v1241 = vmul.f32 %v1240, %v1231
        %v1242 = vmul.f32 %v1240, %v1230
        %v1243 = vstv %s250
        %v1244 = vmul.f32 %v1243, %v1239
        %v1245 = vmul.f32 %v1243, %v1238
        %v1246 = vadd.f32 %v1241, %v1244
        %v1247 = vadd.f32 %v1242, %v1245
        %v1248 = vadd.f32 %v1194, %v1246
        %v1249 = vadd.f32 %v1195, %v1247
        %1250 = vrot.lane.b32.xlu0 %v394, 111
        %v1251 = vpop.permute.xlu0 %1250
        %1252 = vrot.lane.b32.xlu0 %v395, 111
        %v1253 = vpop.permute.xlu0 %1252
        %1254 = vrot.lane.b32.xlu0 %v396, 111
        %v1255 = vpop.permute.xlu0 %1254
        %vm1256 = vcmp.lt.s32.totalorder %v275, 111
        %v1257 = vsel %vm1256, %v1253, %v1255
        %v1258 = vsel %vm1256, %v1251, %v1253
        %1259 = vrot.lane.b32.xlu0 %v410, 111
        %v1260 = vpop.permute.xlu0 %1259
        %1261 = vrot.lane.b32.xlu0 %v411, 111
        %v1262 = vpop.permute.xlu0 %1261
        %1263 = vrot.lane.b32.xlu0 %v412, 111
        %v1264 = vpop.permute.xlu0 %1263
        %v1265 = vsel %vm1256, %v1262, %v1264
        %v1266 = vsel %vm1256, %v1260, %v1262
        %v1267 = vstv %s208
        %v1268 = vmul.f32 %v1267, %v1258
        %v1269 = vmul.f32 %v1267, %v1257
        %v1270 = vstv %s257
        %v1271 = vmul.f32 %v1270, %v1266
        %v1272 = vmul.f32 %v1270, %v1265
        %v1273 = vadd.f32 %v1268, %v1271
        %v1274 = vadd.f32 %v1269, %v1272
        %v1275 = vadd.f32 %v1221, %v1273
        %v1276 = vadd.f32 %v1222, %v1274
        %1277 = vrot.lane.b32.xlu0 %v394, 95
        %v1278 = vpop.permute.xlu0 %1277
        %1279 = vrot.lane.b32.xlu0 %v395, 95
        %v1280 = vpop.permute.xlu0 %1279
        %1281 = vrot.lane.b32.xlu0 %v396, 95
        %v1282 = vpop.permute.xlu0 %1281
        %vm1283 = vcmp.lt.s32.totalorder %v275, 95
        %v1284 = vsel %vm1283, %v1280, %v1282
        %v1285 = vsel %vm1283, %v1278, %v1280
        %1286 = vrot.lane.b32.xlu0 %v410, 95
        %v1287 = vpop.permute.xlu0 %1286
        %1288 = vrot.lane.b32.xlu0 %v411, 95
        %v1289 = vpop.permute.xlu0 %1288
        %1290 = vrot.lane.b32.xlu0 %v412, 95
        %v1291 = vpop.permute.xlu0 %1290
        %v1292 = vsel %vm1283, %v1289, %v1291
        %v1293 = vsel %vm1283, %v1287, %v1289
        %v1294 = vstv %s215
        %v1295 = vmul.f32 %v1294, %v1285
        %v1296 = vmul.f32 %v1294, %v1284
        %v1297 = vstv %s264
        %v1298 = vmul.f32 %v1297, %v1293
        %v1299 = vmul.f32 %v1297, %v1292
        %v1300 = vadd.f32 %v1295, %v1298
        %v1301 = vadd.f32 %v1296, %v1299
        %v1302 = vadd.f32 %v1248, %v1300
        %v1303 = vadd.f32 %v1249, %v1301
        %1304 = vrot.lane.b32.xlu0 %v394, 79
        %v1305 = vpop.permute.xlu0 %1304
        %1306 = vrot.lane.b32.xlu0 %v395, 79
        %v1307 = vpop.permute.xlu0 %1306
        %1308 = vrot.lane.b32.xlu0 %v396, 79
        %v1309 = vpop.permute.xlu0 %1308
        %vm1310 = vcmp.lt.s32.totalorder %v275, 79
        %v1311 = vsel %vm1310, %v1307, %v1309
        %v1312 = vsel %vm1310, %v1305, %v1307
        %1313 = vrot.lane.b32.xlu0 %v410, 79
        %v1314 = vpop.permute.xlu0 %1313
        %1315 = vrot.lane.b32.xlu0 %v411, 79
        %v1316 = vpop.permute.xlu0 %1315
        %1317 = vrot.lane.b32.xlu0 %v412, 79
        %v1318 = vpop.permute.xlu0 %1317
        %v1319 = vsel %vm1310, %v1316, %v1318
        %v1320 = vsel %vm1310, %v1314, %v1316
        %v1321 = vstv %s222
        %v1322 = vmul.f32 %v1321, %v1312
        %v1323 = vmul.f32 %v1321, %v1311
        %v1324 = vstv %s271
        %v1325 = vmul.f32 %v1324, %v1320
        %v1326 = vmul.f32 %v1324, %v1319
        %v1327 = vadd.f32 %v1322, %v1325
        %v1328 = vadd.f32 %v1323, %v1326
        %v1329 = vadd.f32 %v1275, %v1327
        %v1330 = vadd.f32 %v1276, %v1328
        %v1331 = vadd.f32 %v1329, %v1302
        %v1332 = vadd.f32 %v1330, %v1303
        %v1333 = vsel %vm319, %v1331, 0.0
        %v1334 = vsel %vm320, %v1332, 0.0
        %1335 = vrot.lane.b32.xlu0 %v394, 46
        %v1336 = vpop.permute.xlu0 %1335
        %1337 = vrot.lane.b32.xlu0 %v395, 46
        %v1338 = vpop.permute.xlu0 %1337
        %1339 = vrot.lane.b32.xlu0 %v396, 46
        %v1340 = vpop.permute.xlu0 %1339
        %vm1341 = vcmp.lt.s32.totalorder %v275, 46
        %v1342 = vsel %vm1341, %v1336, %v1338
        %v1343 = vsel %vm1341, %v1340, %v1336
        %1344 = vrot.lane.b32.xlu0 %v410, 46
        %v1345 = vpop.permute.xlu0 %1344
        %1346 = vrot.lane.b32.xlu0 %v411, 46
        %v1347 = vpop.permute.xlu0 %1346
        %1348 = vrot.lane.b32.xlu0 %v412, 46
        %v1349 = vpop.permute.xlu0 %1348
        %v1350 = vsel %vm1341, %v1345, %v1347
        %v1351 = vsel %vm1341, %v1349, %v1345
        %v1352 = vstv %s181
        %v1353 = vmul.f32 %v1352, %v1343
        %v1354 = vmul.f32 %v1352, %v1342
        %v1355 = vstv %s230
        %v1356 = vmul.f32 %v1355, %v1351
        %v1357 = vmul.f32 %v1355, %v1350
        %v1358 = vadd.f32 %v1353, %v1356
        %v1359 = vadd.f32 %v1354, %v1357
        %1360 = vrot.lane.b32.xlu0 %v394, 30
        %v1361 = vpop.permute.xlu0 %1360
        %1362 = vrot.lane.b32.xlu0 %v395, 30
        %v1363 = vpop.permute.xlu0 %1362
        %1364 = vrot.lane.b32.xlu0 %v396, 30
        %v1365 = vpop.permute.xlu0 %1364
        %vm1366 = vcmp.lt.s32.totalorder %v275, 30
        %v1367 = vsel %vm1366, %v1361, %v1363
        %v1368 = vsel %vm1366, %v1365, %v1361
        %1369 = vrot.lane.b32.xlu0 %v410, 30
        %v1370 = vpop.permute.xlu0 %1369
        %1371 = vrot.lane.b32.xlu0 %v411, 30
        %v1372 = vpop.permute.xlu0 %1371
        %1373 = vrot.lane.b32.xlu0 %v412, 30
        %v1374 = vpop.permute.xlu0 %1373
        %v1375 = vsel %vm1366, %v1370, %v1372
        %v1376 = vsel %vm1366, %v1374, %v1370
        %v1377 = vstv %s188
        %v1378 = vmul.f32 %v1377, %v1368
        %v1379 = vmul.f32 %v1377, %v1367
        %v1380 = vstv %s237
        %v1381 = vmul.f32 %v1380, %v1376
        %v1382 = vmul.f32 %v1380, %v1375
        %v1383 = vadd.f32 %v1378, %v1381
        %v1384 = vadd.f32 %v1379, %v1382
        %1385 = vrot.lane.b32.xlu0 %v394, 14
        %v1386 = vpop.permute.xlu0 %1385
        %1387 = vrot.lane.b32.xlu0 %v395, 14
        %v1388 = vpop.permute.xlu0 %1387
        %1389 = vrot.lane.b32.xlu0 %v396, 14
        %v1390 = vpop.permute.xlu0 %1389
        %vm1391 = vcmp.lt.s32.totalorder %v275, 14
        %v1392 = vsel %vm1391, %v1386, %v1388
        %v1393 = vsel %vm1391, %v1390, %v1386
        %1394 = vrot.lane.b32.xlu0 %v410, 14
        %v1395 = vpop.permute.xlu0 %1394
        %1396 = vrot.lane.b32.xlu0 %v411, 14
        %v1397 = vpop.permute.xlu0 %1396
        %1398 = vrot.lane.b32.xlu0 %v412, 14
        %v1399 = vpop.permute.xlu0 %1398
        %v1400 = vsel %vm1391, %v1395, %v1397
        %v1401 = vsel %vm1391, %v1399, %v1395
        %v1402 = vstv %s195
        %v1403 = vmul.f32 %v1402, %v1393
        %v1404 = vmul.f32 %v1402, %v1392
        %v1405 = vstv %s244
        %v1406 = vmul.f32 %v1405, %v1401
        %v1407 = vmul.f32 %v1405, %v1400
        %v1408 = vadd.f32 %v1403, %v1406
        %v1409 = vadd.f32 %v1404, %v1407
        %v1410 = vadd.f32 %v1358, %v1408
        %v1411 = vadd.f32 %v1359, %v1409
        %1412 = vrot.lane.b32.xlu0 %v394, 126
        %v1413 = vpop.permute.xlu0 %1412
        %1414 = vrot.lane.b32.xlu0 %v395, 126
        %v1415 = vpop.permute.xlu0 %1414
        %1416 = vrot.lane.b32.xlu0 %v396, 126
        %v1417 = vpop.permute.xlu0 %1416
        %vm1418 = vcmp.lt.s32.totalorder %v275, 126
        %v1419 = vsel %vm1418, %v1415, %v1417
        %v1420 = vsel %vm1418, %v1413, %v1415
        %1421 = vrot.lane.b32.xlu0 %v410, 126
        %v1422 = vpop.permute.xlu0 %1421
        %1423 = vrot.lane.b32.xlu0 %v411, 126
        %v1424 = vpop.permute.xlu0 %1423
        %1425 = vrot.lane.b32.xlu0 %v412, 126
        %v1426 = vpop.permute.xlu0 %1425
        %v1427 = vsel %vm1418, %v1424, %v1426
        %v1428 = vsel %vm1418, %v1422, %v1424
        %v1429 = vstv %s202
        %v1430 = vmul.f32 %v1429, %v1420
        %v1431 = vmul.f32 %v1429, %v1419
        %v1432 = vstv %s251
        %v1433 = vmul.f32 %v1432, %v1428
        %v1434 = vmul.f32 %v1432, %v1427
        %v1435 = vadd.f32 %v1430, %v1433
        %v1436 = vadd.f32 %v1431, %v1434
        %v1437 = vadd.f32 %v1383, %v1435
        %v1438 = vadd.f32 %v1384, %v1436
        %1439 = vrot.lane.b32.xlu0 %v394, 110
        %v1440 = vpop.permute.xlu0 %1439
        %1441 = vrot.lane.b32.xlu0 %v395, 110
        %v1442 = vpop.permute.xlu0 %1441
        %1443 = vrot.lane.b32.xlu0 %v396, 110
        %v1444 = vpop.permute.xlu0 %1443
        %vm1445 = vcmp.lt.s32.totalorder %v275, 110
        %v1446 = vsel %vm1445, %v1442, %v1444
        %v1447 = vsel %vm1445, %v1440, %v1442
        %1448 = vrot.lane.b32.xlu0 %v410, 110
        %v1449 = vpop.permute.xlu0 %1448
        %1450 = vrot.lane.b32.xlu0 %v411, 110
        %v1451 = vpop.permute.xlu0 %1450
        %1452 = vrot.lane.b32.xlu0 %v412, 110
        %v1453 = vpop.permute.xlu0 %1452
        %v1454 = vsel %vm1445, %v1451, %v1453
        %v1455 = vsel %vm1445, %v1449, %v1451
        %v1456 = vstv %s209
        %v1457 = vmul.f32 %v1456, %v1447
        %v1458 = vmul.f32 %v1456, %v1446
        %v1459 = vstv %s258
        %v1460 = vmul.f32 %v1459, %v1455
        %v1461 = vmul.f32 %v1459, %v1454
        %v1462 = vadd.f32 %v1457, %v1460
        %v1463 = vadd.f32 %v1458, %v1461
        %v1464 = vadd.f32 %v1410, %v1462
        %v1465 = vadd.f32 %v1411, %v1463
        %1466 = vrot.lane.b32.xlu0 %v394, 94
        %v1467 = vpop.permute.xlu0 %1466
        %1468 = vrot.lane.b32.xlu0 %v395, 94
        %v1469 = vpop.permute.xlu0 %1468
        %1470 = vrot.lane.b32.xlu0 %v396, 94
        %v1471 = vpop.permute.xlu0 %1470
        %vm1472 = vcmp.lt.s32.totalorder %v275, 94
        %v1473 = vsel %vm1472, %v1469, %v1471
        %v1474 = vsel %vm1472, %v1467, %v1469
        %1475 = vrot.lane.b32.xlu0 %v410, 94
        %v1476 = vpop.permute.xlu0 %1475
        %1477 = vrot.lane.b32.xlu0 %v411, 94
        %v1478 = vpop.permute.xlu0 %1477
        %1479 = vrot.lane.b32.xlu0 %v412, 94
        %v1480 = vpop.permute.xlu0 %1479
        %v1481 = vsel %vm1472, %v1478, %v1480
        %v1482 = vsel %vm1472, %v1476, %v1478
        %v1483 = vstv %s216
        %v1484 = vmul.f32 %v1483, %v1474
        %v1485 = vmul.f32 %v1483, %v1473
        %v1486 = vstv %s265
        %v1487 = vmul.f32 %v1486, %v1482
        %v1488 = vmul.f32 %v1486, %v1481
        %v1489 = vadd.f32 %v1484, %v1487
        %v1490 = vadd.f32 %v1485, %v1488
        %v1491 = vadd.f32 %v1437, %v1489
        %v1492 = vadd.f32 %v1438, %v1490
        %1493 = vrot.lane.b32.xlu0 %v394, 78
        %v1494 = vpop.permute.xlu0 %1493
        %1495 = vrot.lane.b32.xlu0 %v395, 78
        %v1496 = vpop.permute.xlu0 %1495
        %1497 = vrot.lane.b32.xlu0 %v396, 78
        %v1498 = vpop.permute.xlu0 %1497
        %vm1499 = vcmp.lt.s32.totalorder %v275, 78
        %v1500 = vsel %vm1499, %v1496, %v1498
        %v1501 = vsel %vm1499, %v1494, %v1496
        %1502 = vrot.lane.b32.xlu0 %v410, 78
        %v1503 = vpop.permute.xlu0 %1502
        %1504 = vrot.lane.b32.xlu0 %v411, 78
        %v1505 = vpop.permute.xlu0 %1504
        %1506 = vrot.lane.b32.xlu0 %v412, 78
        %v1507 = vpop.permute.xlu0 %1506
        %v1508 = vsel %vm1499, %v1505, %v1507
        %v1509 = vsel %vm1499, %v1503, %v1505
        %v1510 = vstv %s223
        %v1511 = vmul.f32 %v1510, %v1501
        %v1512 = vmul.f32 %v1510, %v1500
        %v1513 = vstv %s272
        %v1514 = vmul.f32 %v1513, %v1509
        %v1515 = vmul.f32 %v1513, %v1508
        %v1516 = vadd.f32 %v1511, %v1514
        %v1517 = vadd.f32 %v1512, %v1515
        %v1518 = vadd.f32 %v1464, %v1516
        %v1519 = vadd.f32 %v1465, %v1517
        %v1520 = vadd.f32 %v1518, %v1491
        %v1521 = vadd.f32 %v1519, %v1492
        %v1522 = vsel %vm323, %v1520, 0.0
        %v1523 = vsel %vm324, %v1521, 0.0
        %1524 = vrot.lane.b32.xlu0 %v394, 45
        %v1525 = vpop.permute.xlu0 %1524
        %1526 = vrot.lane.b32.xlu0 %v395, 45
        %v1527 = vpop.permute.xlu0 %1526
        %1528 = vrot.lane.b32.xlu0 %v396, 45
        %v1529 = vpop.permute.xlu0 %1528
        %vm1530 = vcmp.lt.s32.totalorder %v275, 45
        %v1531 = vsel %vm1530, %v1525, %v1527
        %v1532 = vsel %vm1530, %v1529, %v1525
        %1533 = vrot.lane.b32.xlu0 %v410, 45
        %v1534 = vpop.permute.xlu0 %1533
        %1535 = vrot.lane.b32.xlu0 %v411, 45
        %v1536 = vpop.permute.xlu0 %1535
        %1537 = vrot.lane.b32.xlu0 %v412, 45
        %v1538 = vpop.permute.xlu0 %1537
        %v1539 = vsel %vm1530, %v1534, %v1536
        %v1540 = vsel %vm1530, %v1538, %v1534
        %v1541 = vstv %s182
        %v1542 = vmul.f32 %v1541, %v1532
        %v1543 = vmul.f32 %v1541, %v1531
        %v1544 = vstv %s231
        %v1545 = vmul.f32 %v1544, %v1540
        %v1546 = vmul.f32 %v1544, %v1539
        %v1547 = vadd.f32 %v1542, %v1545
        %v1548 = vadd.f32 %v1543, %v1546
        %1549 = vrot.lane.b32.xlu0 %v394, 29
        %v1550 = vpop.permute.xlu0 %1549
        %1551 = vrot.lane.b32.xlu0 %v395, 29
        %v1552 = vpop.permute.xlu0 %1551
        %1553 = vrot.lane.b32.xlu0 %v396, 29
        %v1554 = vpop.permute.xlu0 %1553
        %vm1555 = vcmp.lt.s32.totalorder %v275, 29
        %v1556 = vsel %vm1555, %v1550, %v1552
        %v1557 = vsel %vm1555, %v1554, %v1550
        %1558 = vrot.lane.b32.xlu0 %v410, 29
        %v1559 = vpop.permute.xlu0 %1558
        %1560 = vrot.lane.b32.xlu0 %v411, 29
        %v1561 = vpop.permute.xlu0 %1560
        %1562 = vrot.lane.b32.xlu0 %v412, 29
        %v1563 = vpop.permute.xlu0 %1562
        %v1564 = vsel %vm1555, %v1559, %v1561
        %v1565 = vsel %vm1555, %v1563, %v1559
        %v1566 = vstv %s189
        %v1567 = vmul.f32 %v1566, %v1557
        %v1568 = vmul.f32 %v1566, %v1556
        %v1569 = vstv %s238
        %v1570 = vmul.f32 %v1569, %v1565
        %v1571 = vmul.f32 %v1569, %v1564
        %v1572 = vadd.f32 %v1567, %v1570
        %v1573 = vadd.f32 %v1568, %v1571
        %1574 = vrot.lane.b32.xlu0 %v394, 13
        %v1575 = vpop.permute.xlu0 %1574
        %1576 = vrot.lane.b32.xlu0 %v395, 13
        %v1577 = vpop.permute.xlu0 %1576
        %1578 = vrot.lane.b32.xlu0 %v396, 13
        %v1579 = vpop.permute.xlu0 %1578
        %vm1580 = vcmp.lt.s32.totalorder %v275, 13
        %v1581 = vsel %vm1580, %v1575, %v1577
        %v1582 = vsel %vm1580, %v1579, %v1575
        %1583 = vrot.lane.b32.xlu0 %v410, 13
        %v1584 = vpop.permute.xlu0 %1583
        %1585 = vrot.lane.b32.xlu0 %v411, 13
        %v1586 = vpop.permute.xlu0 %1585
        %1587 = vrot.lane.b32.xlu0 %v412, 13
        %v1588 = vpop.permute.xlu0 %1587
        %v1589 = vsel %vm1580, %v1584, %v1586
        %v1590 = vsel %vm1580, %v1588, %v1584
        %v1591 = vstv %s196
        %v1592 = vmul.f32 %v1591, %v1582
        %v1593 = vmul.f32 %v1591, %v1581
        %v1594 = vstv %s245
        %v1595 = vmul.f32 %v1594, %v1590
        %v1596 = vmul.f32 %v1594, %v1589
        %v1597 = vadd.f32 %v1592, %v1595
        %v1598 = vadd.f32 %v1593, %v1596
        %v1599 = vadd.f32 %v1547, %v1597
        %v1600 = vadd.f32 %v1548, %v1598
        %1601 = vrot.lane.b32.xlu0 %v394, 125
        %v1602 = vpop.permute.xlu0 %1601
        %1603 = vrot.lane.b32.xlu0 %v395, 125
        %v1604 = vpop.permute.xlu0 %1603
        %1605 = vrot.lane.b32.xlu0 %v396, 125
        %v1606 = vpop.permute.xlu0 %1605
        %vm1607 = vcmp.lt.s32.totalorder %v275, 125
        %v1608 = vsel %vm1607, %v1604, %v1606
        %v1609 = vsel %vm1607, %v1602, %v1604
        %1610 = vrot.lane.b32.xlu0 %v410, 125
        %v1611 = vpop.permute.xlu0 %1610
        %1612 = vrot.lane.b32.xlu0 %v411, 125
        %v1613 = vpop.permute.xlu0 %1612
        %1614 = vrot.lane.b32.xlu0 %v412, 125
        %v1615 = vpop.permute.xlu0 %1614
        %v1616 = vsel %vm1607, %v1613, %v1615
        %v1617 = vsel %vm1607, %v1611, %v1613
        %v1618 = vstv %s203
        %v1619 = vmul.f32 %v1618, %v1609
        %v1620 = vmul.f32 %v1618, %v1608
        %v1621 = vstv %s252
        %v1622 = vmul.f32 %v1621, %v1617
        %v1623 = vmul.f32 %v1621, %v1616
        %v1624 = vadd.f32 %v1619, %v1622
        %v1625 = vadd.f32 %v1620, %v1623
        %v1626 = vadd.f32 %v1572, %v1624
        %v1627 = vadd.f32 %v1573, %v1625
        %1628 = vrot.lane.b32.xlu0 %v394, 109
        %v1629 = vpop.permute.xlu0 %1628
        %1630 = vrot.lane.b32.xlu0 %v395, 109
        %v1631 = vpop.permute.xlu0 %1630
        %1632 = vrot.lane.b32.xlu0 %v396, 109
        %v1633 = vpop.permute.xlu0 %1632
        %vm1634 = vcmp.lt.s32.totalorder %v275, 109
        %v1635 = vsel %vm1634, %v1631, %v1633
        %v1636 = vsel %vm1634, %v1629, %v1631
        %1637 = vrot.lane.b32.xlu0 %v410, 109
        %v1638 = vpop.permute.xlu0 %1637
        %1639 = vrot.lane.b32.xlu0 %v411, 109
        %v1640 = vpop.permute.xlu0 %1639
        %1641 = vrot.lane.b32.xlu0 %v412, 109
        %v1642 = vpop.permute.xlu0 %1641
        %v1643 = vsel %vm1634, %v1640, %v1642
        %v1644 = vsel %vm1634, %v1638, %v1640
        %v1645 = vstv %s210
        %v1646 = vmul.f32 %v1645, %v1636
        %v1647 = vmul.f32 %v1645, %v1635
        %v1648 = vstv %s259
        %v1649 = vmul.f32 %v1648, %v1644
        %v1650 = vmul.f32 %v1648, %v1643
        %v1651 = vadd.f32 %v1646, %v1649
        %v1652 = vadd.f32 %v1647, %v1650
        %v1653 = vadd.f32 %v1599, %v1651
        %v1654 = vadd.f32 %v1600, %v1652
        %1655 = vrot.lane.b32.xlu0 %v394, 93
        %v1656 = vpop.permute.xlu0 %1655
        %1657 = vrot.lane.b32.xlu0 %v395, 93
        %v1658 = vpop.permute.xlu0 %1657
        %1659 = vrot.lane.b32.xlu0 %v396, 93
        %v1660 = vpop.permute.xlu0 %1659
        %vm1661 = vcmp.lt.s32.totalorder %v275, 93
        %v1662 = vsel %vm1661, %v1658, %v1660
        %v1663 = vsel %vm1661, %v1656, %v1658
        %1664 = vrot.lane.b32.xlu0 %v410, 93
        %v1665 = vpop.permute.xlu0 %1664
        %1666 = vrot.lane.b32.xlu0 %v411, 93
        %v1667 = vpop.permute.xlu0 %1666
        %1668 = vrot.lane.b32.xlu0 %v412, 93
        %v1669 = vpop.permute.xlu0 %1668
        %v1670 = vsel %vm1661, %v1667, %v1669
        %v1671 = vsel %vm1661, %v1665, %v1667
        %v1672 = vstv %s217
        %v1673 = vmul.f32 %v1672, %v1663
        %v1674 = vmul.f32 %v1672, %v1662
        %v1675 = vstv %s266
        %v1676 = vmul.f32 %v1675, %v1671
        %v1677 = vmul.f32 %v1675, %v1670
        %v1678 = vadd.f32 %v1673, %v1676
        %v1679 = vadd.f32 %v1674, %v1677
        %v1680 = vadd.f32 %v1626, %v1678
        %v1681 = vadd.f32 %v1627, %v1679
        %1682 = vrot.lane.b32.xlu0 %v394, 77
        %v1683 = vpop.permute.xlu0 %1682
        %1684 = vrot.lane.b32.xlu0 %v395, 77
        %v1685 = vpop.permute.xlu0 %1684
        %1686 = vrot.lane.b32.xlu0 %v396, 77
        %v1687 = vpop.permute.xlu0 %1686
        %vm1688 = vcmp.lt.s32.totalorder %v275, 77
        %v1689 = vsel %vm1688, %v1685, %v1687
        %v1690 = vsel %vm1688, %v1683, %v1685
        %1691 = vrot.lane.b32.xlu0 %v410, 77
        %v1692 = vpop.permute.xlu0 %1691
        %1693 = vrot.lane.b32.xlu0 %v411, 77
        %v1694 = vpop.permute.xlu0 %1693
        %1695 = vrot.lane.b32.xlu0 %v412, 77
        %v1696 = vpop.permute.xlu0 %1695
        %v1697 = vsel %vm1688, %v1694, %v1696
        %v1698 = vsel %vm1688, %v1692, %v1694
        %v1699 = vstv %s224
        %v1700 = vmul.f32 %v1699, %v1690
        %v1701 = vmul.f32 %v1699, %v1689
        %v1702 = vstv %s273
        %v1703 = vmul.f32 %v1702, %v1698
        %v1704 = vmul.f32 %v1702, %v1697
        %v1705 = vadd.f32 %v1700, %v1703
        %v1706 = vadd.f32 %v1701, %v1704
        %v1707 = vadd.f32 %v1653, %v1705
        %v1708 = vadd.f32 %v1654, %v1706
        %v1709 = vadd.f32 %v1707, %v1680
        %v1710 = vadd.f32 %v1708, %v1681
        %v1711 = vsel %vm327, %v1709, 0.0
        %v1712 = vsel %vm328, %v1710, 0.0
        %v1713 = vadd.f32 %v594, %v783
        %v1714 = vadd.f32 %v595, %v784
        %v1715 = vadd.f32 %v972, %v1144
        %v1716 = vadd.f32 %v973, %v1145
        %v1717 = vadd.f32 %v1713, %v1715
        %v1718 = vadd.f32 %v1714, %v1716
        %v1719 = vadd.f32 %v1333, %v1522
        %v1720 = vadd.f32 %v1334, %v1523
        %v1721 = vadd.f32 %v1719, %v1711
        %v1722 = vadd.f32 %v1720, %v1712
        %v1723 = vadd.f32 %v1717, %v1721
        %v1724 = vadd.f32 %v1718, %v1722
        %v1725 = vxor.u32 %v1723, 2147483648
        %v1726 = vxor.u32 %v1724, 2147483648
        %v1727 = vmul.f32 %v1725, 1.442695
        %v1728 = vpow.pop %v1727
        %v1729 = vmul.f32 %v1726, 1.442695
        %v1730 = vpow.pop %v1729
        %v1731 = vadd.f32 %v1728, 1.0
        %v1732 = vadd.f32 %v1730, 1.0
        %v1733 = vrcp.pop %v1731
        %v1734 = vmul.f32 %v1731, %v1733
        %v1735 = vsub.f32 1.0, %v1734
        %v1736 = vmul.f32 %v1733, %v1735
        %v1737 = vadd.f32 %v1733, %v1736
        %vm1738 = vweird.f32 %v1731
        %vm1739 = vweird.f32 %v1733
        %vm1740 = vmor %vm1738, %vm1739
        %v1741 = vsel %vm1740, %v1733, %v1737
        %v1742 = vand.u32 2147483647, %v1731
        %vm1743 = vcmp.eq.f32.partialorder %v1742, 8.507059e+37
        %v1744 = vand.u32 %v1731, 2147483648
        %v1745 = vor.u32 1.1754944e-38, %v1744
        %v1746 = vsel %vm1743, %v1745, %v1741
        %v1747 = vmul.f32 1.0, %v1746
        %v1748 = vrcp.pop %v1732
        %v1749 = vmul.f32 %v1732, %v1748
        %v1750 = vsub.f32 1.0, %v1749
        %v1751 = vmul.f32 %v1748, %v1750
        %v1752 = vadd.f32 %v1748, %v1751
        %vm1753 = vweird.f32 %v1732
        %vm1754 = vweird.f32 %v1748
        %vm1755 = vmor %vm1753, %vm1754
        %v1756 = vsel %vm1755, %v1748, %v1752
        %v1757 = vand.u32 2147483647, %v1732
        %vm1758 = vcmp.eq.f32.partialorder %v1757, 8.507059e+37
        %v1759 = vand.u32 %v1732, 2147483648
        %v1760 = vor.u32 1.1754944e-38, %v1759
        %v1761 = vsel %vm1758, %v1760, %v1756
        %v1762 = vmul.f32 1.0, %v1761
        %v1765 = vrot.slane %v1762, 7
        %v1766 = vsel %vm379, %v1747, %v1765
        %1768 = vst.msk [vmem:[%s175] sm:$0x3] %vm383, %v1766
        %s1769 = sand.u32 %s75, 1
        %s1770 = scalar_lea.sflag [#allocation6], %s1769
        %s1771 = sand.u32 %s75, 1
        %s1772 = smul.addr %s1771, 2
        %s1773 = scalar_lea.vmem [#allocation9], %s1772
        // Predicated region
        $region37: #{tpu_custom_call.1} parent=27 // pred_check
          %p1774 = pneg %p85
        $region38: #{tpu_custom_call.1} parent=27 // pred_check_branch
          %1776 = sbr.rel (%p1774) target = $region40
        $region39: #{tpu_custom_call.1} parent=27 // pred_region
          %1778 = vsyncadd %s1770, 0
          %s1779 = smul.addr %s20, 2
          %s1780 = scalar_lea.hbm %s2, %s1779
          %s1782 = sshll.u32 %s1773, 4
          %s1783 = int_to_ptr.vmem [resolvable:$true] %s1782
          %s1784 = sshll.u32 %s1780, 4
          %s1785 = int_to_ptr.hbm [resolvable:$true] %s1784
          %1787 = dma.vmem_to_hbm [thread:$0]  %s1783, 32, %s1785, %s1770
        $region40: #{tpu_custom_call.1} parent=27 // pred_fallthru
          _
      $region28: #{tpu_custom_call.1} parent=5 // pred_fallthru
        _
      %p1788 = scmp.le.s32.totalorder 2, %s15
      // Predicated region
      $region41: #{tpu_custom_call.1} parent=5 // pred_check
        %p1789 = pneg %p1788
      $region42: #{tpu_custom_call.1} parent=5 // pred_check_branch
        %1791 = sbr.rel (%p1789) target = $region44
      $region43: #{tpu_custom_call.1} parent=5 // pred_region
        %s1792 = ssub.s32 %s15, 2
        // Predicated region
        $region45: #{tpu_custom_call.1} parent=43 // pred_check
          %p1793 = pneg %p91
        $region46: #{tpu_custom_call.1} parent=43 // pred_check_branch
          %1795 = sbr.rel (%p1793) target = $region48
        $region47: #{tpu_custom_call.1} parent=43 // pred_region
          %s1796 = sand.u32 %s76, 1
          %s1797 = scalar_lea.sflag [#allocation6], %s1796
          %s1798 = sand.u32 %s76, 1
          %s1799 = smul.addr %s1798, 2
          %s1800 = scalar_lea.vmem [#allocation9], %s1799
          %1802 = dma.done %s1797, 32
        $region48: #{tpu_custom_call.1} parent=43 // pred_fallthru
          _
      $region44: #{tpu_custom_call.1} parent=5 // pred_fallthru
        _
    $region6: #{tpu_custom_call.1} parent=1 // loop_footer
      %s19 = sadd.s32 1, %s15
    $region7: #{tpu_custom_call.1} parent=1 // loop_footer_branch
      %14 = sbr.rel target = $region3
    $region8: #{tpu_custom_call.1} parent=1 // loop_exit
      _
    %1803 = vsyncpa [#allocation5], 1
    %s1804 = scalar_lea.sflag [#allocation5], 1
    %1805 = vsyncpa %s1804, 1
    %1806 = vsyncpa [#allocation6], 1
    %s1807 = scalar_lea.sflag [#allocation6], 1
    %1808 = vsyncpa %s1807, 1
    %1809 = vsyncpa [#allocation7], 1
    %s1810 = scalar_lea.sflag [#allocation7], 1
    %1811 = vsyncpa %s1810, 1

</llo_original>
